<compile_context>
chip_gen: v7x
topology: tpu7x:2x2x1
jax: 0.10.0
libtpu: 0.0.40
codegen_flags: <defaults>
</compile_context>

<pallas_src>
from functools import partial

import numpy as np
import jax
import jax.numpy as jnp
from jax.experimental import pallas as pl
from jax.experimental.pallas import tpu as pltpu

_LANE = 128
_MIN_TILE = 8 * _LANE  # 1024 samples = one (8, 128) sample slab

# Constant 0/1 permutation matrices (exact under f32 MXU matmul).
#   de-interleave: row r of the (rows, 256) input is [x0_s, x1_s, x0_{s+1}, ...]
#                  -> [x0 plane (128 lanes) | x1 plane (128 lanes)]
#   AoS interleave: [cx plane | cy plane | cz plane] (384 lanes)
#                  -> [cx_s, cy_s, cz_s, cx_{s+1}, ...] (384 lanes)
_J = np.arange(_LANE)
_P_DEINT = np.zeros((2 * _LANE, 2 * _LANE), np.float32)
_P_DEINT[2 * _J, _J] = 1.0
_P_DEINT[2 * _J + 1, _LANE + _J] = 1.0
_P_AOS = np.zeros((3 * _LANE, 3 * _LANE), np.float32)
for _c in range(3):
    _P_AOS[_c * _LANE + _J, 3 * _J + _c] = 1.0


def _material_lookup_kernel(x_ref, p_deint_ref, p_aos_ref, o_ref):
    # x_ref: (TR, 256)  row r = 128 samples' interleaved (x0, x1) pairs.
    # o_ref: (TR, 384)  row r = the same 128 samples' interleaved (cx, cy, cz).
    pairs = x_ref[...]
    # Even/odd lane de-interleave on the MXU (exact 0/1 permutation in f32).
    deint = jnp.dot(pairs, p_deint_ref[...], preferred_element_type=jnp.float32)
    x0 = deint[:, :_LANE]          # xs[:, 0] plane, sample-major
    x1 = deint[:, _LANE:]          # xs[:, 1] plane

    w_costheta = 2.0 * x0
    w_phi = (2.0 * jnp.pi) * x1
    w_sintheta = jnp.sqrt(jnp.maximum(0.0, 1.0 - w_costheta * w_costheta))

    planes = jnp.concatenate(
        [w_sintheta * jnp.cos(w_phi),
         w_sintheta * jnp.sin(w_phi),
         w_costheta],
        axis=1)                    # (TR, 384) planar
    # 3-way AoS interleave on the MXU -> dense (TR, 384) store that is a free
    # reshape of the row-major (N, 3) output.
    o_ref[...] = jnp.dot(planes, p_aos_ref[...],
                         preferred_element_type=jnp.float32)


def _pick_tile(n, max_tile):
    """Samples per grid step: spread N nearly evenly over the minimum number
    of steps (bounds padding waste to <1024 samples/step) while keeping each
    step's block large (amortizes per-step pipeline overhead)."""
    steps = max(1, -(-n // max_tile))
    per_step = -(-n // steps)
    return -(-per_step // _MIN_TILE) * _MIN_TILE


@partial(jax.jit, static_argnames=("max_tile_samples",))
def material_lookup(xs, *, max_tile_samples=131072):
    """xs: (N, C>=2) float.  Returns w_direction: (N, 3) float32."""
    n = xs.shape[0]
    if n == 0:
        return jnp.zeros((0, 3), jnp.float32)

    x = xs[:, :2].astype(jnp.float32)

    tile = _pick_tile(n, max_tile_samples)
    grid = -(-n // tile)
    n_pad = grid * tile
    if n_pad != n:
        x = jnp.pad(x, ((0, n_pad - n), (0, 0)))

    rows = n_pad // _LANE        # sublane rows of 128 samples
    tr = tile // _LANE           # rows per grid step (multiple of 8)

    # Free views of contiguous row-major memory (no HBM transposes):
    x_pairs = x.reshape(rows, 2 * _LANE)
    p_deint = jnp.asarray(_P_DEINT)
    p_aos = jnp.asarray(_P_AOS)

    # ~1664 MACs/sample for the two permutation matmuls + elementwise work.
    macs = n_pad * ((2 * _LANE) * (2 * _LANE) + (3 * _LANE) * (3 * _LANE)) // _LANE
    cost = pl.CostEstimate(flops=2 * macs + 10 * n_pad,
                           transcendentals=3 * n_pad,
                           bytes_accessed=20 * n_pad)

    out = pl.pallas_call(
        _material_lookup_kernel,
        out_shape=jax.ShapeDtypeStruct((rows, 3 * _LANE), jnp.float32),
        grid_spec=pltpu.PrefetchScalarGridSpec(
            num_scalar_prefetch=0,
            grid=(grid,),
            in_specs=[
                pl.BlockSpec((tr, 2 * _LANE), lambda i: (i, 0)),
                pl.BlockSpec((2 * _LANE, 2 * _LANE), lambda i: (0, 0)),
                pl.BlockSpec((3 * _LANE, 3 * _LANE), lambda i: (0, 0)),
            ],
            out_specs=pl.BlockSpec((tr, 3 * _LANE), lambda i: (i, 0)),
        ),
        compiler_params=pltpu.CompilerParams(
            dimension_semantics=("parallel",),
            vmem_limit_bytes=48 * 1024 * 1024,
        ),
        cost_estimate=cost,
    )(x_pairs, p_deint, p_aos)

    # Free reshape of contiguous memory; the slice only copies for ragged N.
    w_direction = out.reshape(n_pad, 3)
    return w_direction if n_pad == n else w_direction[:n]


class MaterialLookUp:
    """Thin wrapper mirroring the PyTorch module (spp is unused in forward)."""

    def __init__(self, spp):
        self.spp = spp

    def __call__(self, xs):
        return material_lookup(xs)


def _reference(xs):
    xs = xs.astype(jnp.float32)
    w_costheta = 2.0 * xs[:, 0]
    w_phi = 2.0 * jnp.pi * xs[:, 1]
    w_sintheta = jnp.sqrt(jnp.maximum(0.0, 1.0 - w_costheta ** 2))
    return jnp.stack(
        (w_sintheta * jnp.cos(w_phi), w_sintheta * jnp.sin(w_phi), w_costheta)
    ).T


if __name__ == "__main__":
    key = jax.random.PRNGKey(0)
    mod = MaterialLookUp(spp=4)

    # N=4096 exercises the exact-multiple path (no padding); N=1000 exercises
    # the ragged-N padding path.
    for n in (4096, 1000):
        xs = jax.random.uniform(key, (n, 2), dtype=jnp.float32)
        out = jax.block_until_ready(mod(xs))
        ref = _reference(xs)
        assert out.shape == (n, 3), out.shape
        err = float(jnp.max(jnp.abs(out - ref)))
        assert jnp.allclose(out, ref, atol=2e-5, rtol=1e-5), f"mismatch: {err}"

    print("KERNEL_OK")
</pallas_src>

<mosaic_0001>
module attributes {stable_mosaic.version = 11 : i64} {
  func.func @_material_lookup_kernel(%arg0: i32, %arg1: memref<32x256xf32, #tpu.memory_space<vmem>>, %arg2: memref<256x256xf32, #tpu.memory_space<vmem>>, %arg3: memref<384x384xf32, #tpu.memory_space<vmem>>, %arg4: memref<32x384xf32, #tpu.memory_space<vmem>>) attributes {dimension_semantics = [#tpu.dimension_semantics<parallel>], iteration_bounds = array<i64: 1>, scalar_prefetch = 0 : i64, scratch_operands = 0 : i64, tpu.core_type = #tpu.core_type<tc>, window_params = [{transform_indices = @transform_0, window_bounds = array<i64: 32, 256>}, {pipeline_mode = #tpu.pipeline_mode<synchronous>, transform_indices = @transform_1, window_bounds = array<i64: 256, 256>}, {pipeline_mode = #tpu.pipeline_mode<synchronous>, transform_indices = @transform_2, window_bounds = array<i64: 384, 384>}, {transform_indices = @transform_3, window_bounds = array<i64: 32, 384>}]} {
    %c0 = arith.constant 0 : index
    %c0_0 = arith.constant 0 : index
    %0 = vector.load %arg1[%c0, %c0_0] : memref<32x256xf32, #tpu.memory_space<vmem>>, vector<32x256xf32>
    %c0_1 = arith.constant 0 : index
    %c0_2 = arith.constant 0 : index
    %1 = vector.load %arg2[%c0_1, %c0_2] : memref<256x256xf32, #tpu.memory_space<vmem>>, vector<256x256xf32>
    %cst = arith.constant dense<0.000000e+00> : vector<32x256xf32>
    %2 = tpu.matmul %0, %1, %cst {dimension_numbers = #tpu.dot_dimension_numbers<[1], [0], [0], [1], [0, 0, 1, 1], [], []>} : vector<32x256xf32>, vector<256x256xf32>, vector<32x256xf32> -> vector<32x256xf32>
    %3 = vector.extract_strided_slice %2 {offsets = [0, 0], sizes = [32, 128], strides = [1, 1]} : vector<32x256xf32> to vector<32x128xf32>
    %4 = vector.extract_strided_slice %2 {offsets = [0, 128], sizes = [32, 128], strides = [1, 1]} : vector<32x256xf32> to vector<32x128xf32>
    %cst_3 = arith.constant 2.000000e+00 : f32
    %5 = vector.broadcast %cst_3 : f32 to vector<32x128xf32>
    %6 = arith.mulf %5, %3 : vector<32x128xf32>
    %cst_4 = arith.constant 6.28318548 : f32
    %7 = vector.broadcast %cst_4 : f32 to vector<32x128xf32>
    %8 = arith.mulf %7, %4 : vector<32x128xf32>
    %9 = arith.mulf %6, %6 : vector<32x128xf32>
    %cst_5 = arith.constant 1.000000e+00 : f32
    %10 = vector.broadcast %cst_5 : f32 to vector<32x128xf32>
    %11 = arith.subf %10, %9 : vector<32x128xf32>
    %cst_6 = arith.constant 0.000000e+00 : f32
    %12 = vector.broadcast %cst_6 : f32 to vector<32x128xf32>
    %13 = arith.maximumf %12, %11 : vector<32x128xf32>
    %14 = math.sqrt %13 : vector<32x128xf32>
    %15 = math.cos %8 : vector<32x128xf32>
    %16 = arith.mulf %14, %15 : vector<32x128xf32>
    %17 = math.sin %8 : vector<32x128xf32>
    %18 = arith.mulf %14, %17 : vector<32x128xf32>
    %19 = tpu.concatenate %16, %18, %6 in 1 : vector<32x128xf32>, vector<32x128xf32>, vector<32x128xf32> -> vector<32x384xf32>
    %c0_7 = arith.constant 0 : index
    %c0_8 = arith.constant 0 : index
    %20 = vector.load %arg3[%c0_7, %c0_8] : memref<384x384xf32, #tpu.memory_space<vmem>>, vector<384x384xf32>
    %cst_9 = arith.constant dense<0.000000e+00> : vector<32x384xf32>
    %21 = tpu.matmul %19, %20, %cst_9 {dimension_numbers = #tpu.dot_dimension_numbers<[1], [0], [0], [1], [0, 0, 1, 1], [], []>} : vector<32x384xf32>, vector<384x384xf32>, vector<32x384xf32> -> vector<32x384xf32>
    %c0_10 = arith.constant 0 : index
    %c0_11 = arith.constant 0 : index
    %22 = vector.load %arg4[%c0_10, %c0_11] : memref<32x384xf32, #tpu.memory_space<vmem>>, vector<32x384xf32>
    tpu.vector_store %arg4[%c0_10, %c0_11], %21 {strides = array<i32>} : memref<32x384xf32, #tpu.memory_space<vmem>>, vector<32x384xf32>,
    return
  }
  func.func @transform_0(%arg0: i32) -> (i32, i32) {
    %c0_i32 = arith.constant 0 : i32
    %c0_i32_0 = arith.constant 0 : i32
    return %arg0, %c0_i32 : i32, i32
  }
  func.func @transform_1(%arg0: i32) -> (i32, i32) {
    %c0_i32 = arith.constant 0 : i32
    %c0_i32_0 = arith.constant 0 : i32
    %c0_i32_1 = arith.constant 0 : i32
    return %c0_i32, %c0_i32_0 : i32, i32
  }
  func.func @transform_2(%arg0: i32) -> (i32, i32) {
    %c0_i32 = arith.constant 0 : i32
    %c0_i32_0 = arith.constant 0 : i32
    %c0_i32_1 = arith.constant 0 : i32
    return %c0_i32, %c0_i32_0 : i32, i32
  }
  func.func @transform_3(%arg0: i32) -> (i32, i32) {
    %c0_i32 = arith.constant 0 : i32
    %c0_i32_0 = arith.constant 0 : i32
    return %arg0, %c0_i32 : i32, i32
  }
}

</mosaic_0001>

<llo_original>
// kernel: material_lookup.1
$region0: #{material_lookup.1}
  #allocation0 [shape = 'u32[]', space=smem, size = 0x4, offset = 0x4, fixed_abs, tag = 'smem constant byte address 0x4 - core index']
  #allocation1 [shape = 'u32[144,128]{1,0:T(1,128)}', space=vmem, size = 0x12000, scoped, tag = 'internal scratch']
  %s0 = inlined_call_operand.vmem [shape: f32[32,256], index: 0, kind: input, shape index: {}]
  %s1 = inlined_call_operand.vmem [shape: f32[256,256], index: 1, kind: input, shape index: {}]
  %s2 = inlined_call_operand.vmem [shape: f32[384,384], index: 2, kind: input, shape index: {}]
  %s3 = inlined_call_operand.vmem [shape: f32[32,384], index: 3, kind: output, shape index: {}]
  %s4 = sld [smem:[#allocation0]]
  $region22: #{material_lookup.1} parent=0
    _
  %s6 = ssub.s32 1, %s4
  %s7 = scalar_select 0, %s6, %s4
  // Predicated region
  $region2: #{material_lookup.1} parent=0 // pred_check
    _
  $region3: #{material_lookup.1} parent=0 // pred_check_branch
    %9 = sbr.rel (0) target = $region5
  $region4: #{material_lookup.1} parent=0 // pred_region
    _
  $region5: #{material_lookup.1} parent=0 // pred_fallthru
    _
  // Predicated region
  $region6: #{material_lookup.1} parent=0 // pred_check
    _
  $region7: #{material_lookup.1} parent=0 // pred_check_branch
    %11 = sbr.rel (0) target = $region9
  $region8: #{material_lookup.1} parent=0 // pred_region
    _
  $region9: #{material_lookup.1} parent=0 // pred_fallthru
    _
  // Predicated region
  $region10: #{material_lookup.1} parent=0 // pred_check
    _
  $region11: #{material_lookup.1} parent=0 // pred_check_branch
    %13 = sbr.rel (0) target = $region13
  $region12: #{material_lookup.1} parent=0 // pred_region
    _
  $region13: #{material_lookup.1} parent=0 // pred_fallthru
    _
  %v14 = vld [vmem:[%s0] sm:$0xff]
  %v15 = vld [vmem:[%s0 + $0x8] sm:$0xff]
  %v16 = vld [vmem:[%s0 + $0x10] sm:$0xff]
  %v17 = vld [vmem:[%s0 + $0x18] sm:$0xff]
  %v18 = vld [vmem:[%s0 + $0x20] sm:$0xff]
  %v19 = vld [vmem:[%s0 + $0x28] sm:$0xff]
  %v20 = vld [vmem:[%s0 + $0x30] sm:$0xff]
  %v21 = vld [vmem:[%s0 + $0x38] sm:$0xff]
  %v22 = vld [vmem:[%s1] sm:$0xff]
  %v23 = vld [vmem:[%s1 + $0x8] sm:$0xff]
  %v24 = vld [vmem:[%s1 + $0x10] sm:$0xff]
  %v25 = vld [vmem:[%s1 + $0x18] sm:$0xff]
  %v26 = vld [vmem:[%s1 + $0x20] sm:$0xff]
  %v27 = vld [vmem:[%s1 + $0x28] sm:$0xff]
  %v28 = vld [vmem:[%s1 + $0x30] sm:$0xff]
  %v29 = vld [vmem:[%s1 + $0x38] sm:$0xff]
  %v30 = vld [vmem:[%s1 + $0x40] sm:$0xff]
  %v31 = vld [vmem:[%s1 + $0x48] sm:$0xff]
  %v32 = vld [vmem:[%s1 + $0x50] sm:$0xff]
  %v33 = vld [vmem:[%s1 + $0x58] sm:$0xff]
  %v34 = vld [vmem:[%s1 + $0x60] sm:$0xff]
  %v35 = vld [vmem:[%s1 + $0x68] sm:$0xff]
  %v36 = vld [vmem:[%s1 + $0x70] sm:$0xff]
  %v37 = vld [vmem:[%s1 + $0x78] sm:$0xff]
  %v38 = vld [vmem:[%s1 + $0x80] sm:$0xff]
  %v39 = vld [vmem:[%s1 + $0x88] sm:$0xff]
  %v40 = vld [vmem:[%s1 + $0x90] sm:$0xff]
  %v41 = vld [vmem:[%s1 + $0x98] sm:$0xff]
  %v42 = vld [vmem:[%s1 + $0xa0] sm:$0xff]
  %v43 = vld [vmem:[%s1 + $0xa8] sm:$0xff]
  %v44 = vld [vmem:[%s1 + $0xb0] sm:$0xff]
  %v45 = vld [vmem:[%s1 + $0xb8] sm:$0xff]
  %v46 = vld [vmem:[%s1 + $0xc0] sm:$0xff]
  %v47 = vld [vmem:[%s1 + $0xc8] sm:$0xff]
  %v48 = vld [vmem:[%s1 + $0xd0] sm:$0xff]
  %v49 = vld [vmem:[%s1 + $0xd8] sm:$0xff]
  %v50 = vld [vmem:[%s1 + $0xe0] sm:$0xff]
  %v51 = vld [vmem:[%s1 + $0xe8] sm:$0xff]
  %v52 = vld [vmem:[%s1 + $0xf0] sm:$0xff]
  %v53 = vld [vmem:[%s1 + $0xf8] sm:$0xff]
  %v54 = vld [vmem:[%s1 + $0x100] sm:$0xff]
  %v55 = vld [vmem:[%s1 + $0x108] sm:$0xff]
  %v56 = vld [vmem:[%s1 + $0x110] sm:$0xff]
  %v57 = vld [vmem:[%s1 + $0x118] sm:$0xff]
  %v58 = vld [vmem:[%s1 + $0x120] sm:$0xff]
  %v59 = vld [vmem:[%s1 + $0x128] sm:$0xff]
  %v60 = vld [vmem:[%s1 + $0x130] sm:$0xff]
  %v61 = vld [vmem:[%s1 + $0x138] sm:$0xff]
  %v62 = vld [vmem:[%s1 + $0x140] sm:$0xff]
  %v63 = vld [vmem:[%s1 + $0x148] sm:$0xff]
  %v64 = vld [vmem:[%s1 + $0x150] sm:$0xff]
  %v65 = vld [vmem:[%s1 + $0x158] sm:$0xff]
  %v66 = vld [vmem:[%s1 + $0x160] sm:$0xff]
  %v67 = vld [vmem:[%s1 + $0x168] sm:$0xff]
  %v68 = vld [vmem:[%s1 + $0x170] sm:$0xff]
  %v69 = vld [vmem:[%s1 + $0x178] sm:$0xff]
  %v70 = vld [vmem:[%s1 + $0x180] sm:$0xff]
  %v71 = vld [vmem:[%s1 + $0x188] sm:$0xff]
  %v72 = vld [vmem:[%s1 + $0x190] sm:$0xff]
  %v73 = vld [vmem:[%s1 + $0x198] sm:$0xff]
  %v74 = vld [vmem:[%s1 + $0x1a0] sm:$0xff]
  %v75 = vld [vmem:[%s1 + $0x1a8] sm:$0xff]
  %v76 = vld [vmem:[%s1 + $0x1b0] sm:$0xff]
  %v77 = vld [vmem:[%s1 + $0x1b8] sm:$0xff]
  %v78 = vld [vmem:[%s1 + $0x1c0] sm:$0xff]
  %v79 = vld [vmem:[%s1 + $0x1c8] sm:$0xff]
  %v80 = vld [vmem:[%s1 + $0x1d0] sm:$0xff]
  %v81 = vld [vmem:[%s1 + $0x1d8] sm:$0xff]
  %v82 = vld [vmem:[%s1 + $0x1e0] sm:$0xff]
  %v83 = vld [vmem:[%s1 + $0x1e8] sm:$0xff]
  %v84 = vld [vmem:[%s1 + $0x1f0] sm:$0xff]
  %v85 = vld [vmem:[%s1 + $0x1f8] sm:$0xff]
  %86 = vmatprep.subr.mxu0 %v23
  %87 = vmatpush1.msra.mxu0 %v22
  %88 = vmatprep.subr.mxu0 %v25
  %89 = vmatpush1.msra.mxu0 %v24
  %90 = vmatprep.subr.mxu0 %v27
  %91 = vmatpush1.msra.mxu0 %v26
  %92 = vmatprep.subr.mxu0 %v29
  %93 = vmatpush1.msra.mxu0 %v28
  %94 = vmatprep.subr.mxu0 %v31
  %95 = vmatpush1.msra.mxu0 %v30
  %96 = vmatprep.subr.mxu0 %v33
  %97 = vmatpush1.msra.mxu0 %v32
  %98 = vmatprep.subr.mxu0 %v35
  %99 = vmatpush1.msra.mxu0 %v34
  %100 = vmatprep.subr.mxu0 %v37
  %101 = vmatpush1.msra.mxu0 %v36
  %102 = vmatprep.subr.mxu0 %v39
  %103 = vmatpush1.msra.mxu0 %v38
  %104 = vmatprep.subr.mxu0 %v41
  %105 = vmatpush1.msra.mxu0 %v40
  %106 = vmatprep.subr.mxu0 %v43
  %107 = vmatpush1.msra.mxu0 %v42
  %108 = vmatprep.subr.mxu0 %v45
  %109 = vmatpush1.msra.mxu0 %v44
  %110 = vmatprep.subr.mxu0 %v47
  %111 = vmatpush1.msra.mxu0 %v46
  %112 = vmatprep.subr.mxu0 %v49
  %113 = vmatpush1.msra.mxu0 %v48
  %114 = vmatprep.subr.mxu0 %v51
  %115 = vmatpush1.msra.mxu0 %v50
  %116 = vmatprep.subr.mxu0 %v53
  %117 = vmatpush1.msra.mxu0 %v52
  %118 = vmatprep.subr.mxu0 %v55
  %119 = vmatpush1.msra.mxu0 %v54
  %120 = vmatprep.subr.mxu0 %v57
  %121 = vmatpush1.msra.mxu0 %v56
  %122 = vmatprep.subr.mxu0 %v59
  %123 = vmatpush1.msra.mxu0 %v58
  %124 = vmatprep.subr.mxu0 %v61
  %125 = vmatpush1.msra.mxu0 %v60
  %126 = vmatprep.subr.mxu0 %v63
  %127 = vmatpush1.msra.mxu0 %v62
  %128 = vmatprep.subr.mxu0 %v65
  %129 = vmatpush1.msra.mxu0 %v64
  %130 = vmatprep.subr.mxu0 %v67
  %131 = vmatpush1.msra.mxu0 %v66
  %132 = vmatprep.subr.mxu0 %v69
  %133 = vmatpush1.msra.mxu0 %v68
  %134 = vmatprep.subr.mxu0 %v71
  %135 = vmatpush1.msra.mxu0 %v70
  %136 = vmatprep.subr.mxu0 %v73
  %137 = vmatpush1.msra.mxu0 %v72
  %138 = vmatprep.subr.mxu0 %v75
  %139 = vmatpush1.msra.mxu0 %v74
  %140 = vmatprep.subr.mxu0 %v77
  %141 = vmatpush1.msra.mxu0 %v76
  %142 = vmatprep.subr.mxu0 %v79
  %143 = vmatpush1.msra.mxu0 %v78
  %144 = vmatprep.subr.mxu0 %v81
  %145 = vmatpush1.msra.mxu0 %v80
  %146 = vmatprep.subr.mxu0 %v83
  %147 = vmatpush1.msra.mxu0 %v82
  %148 = vmatprep.subr.mxu0 %v85
  %149 = vmatpush1.msra.mxu0 %v84
  %150 = vmatprep.mubr.f32.mxu0 %v15
  %151 = vmatmul.mubr.f32.gmra.mrb[0].mxu0 %v14
  %v152 = vpop.f32.mrb[0].mxu0
  %v153 = vadd.f32 0.0, %v152
  %v154 = vpop.f32.mrb[0].mxu0
  %v155 = vadd.f32 0.0, %v154
  %156 = vmatprep.mubr.f32.mxu0 %v17
  %157 = vmatmul.mubr.f32.gmra.mrb[0].mxu0 %v16
  %v158 = vpop.f32.mrb[0].mxu0
  %v159 = vadd.f32 0.0, %v158
  %v160 = vpop.f32.mrb[0].mxu0
  %v161 = vadd.f32 0.0, %v160
  %162 = vmatprep.mubr.f32.mxu0 %v19
  %163 = vmatmul.mubr.f32.gmra.mrb[0].mxu0 %v18
  %v164 = vpop.f32.mrb[0].mxu0
  %v165 = vadd.f32 0.0, %v164
  %v166 = vpop.f32.mrb[0].mxu0
  %v167 = vadd.f32 0.0, %v166
  %168 = vmatprep.mubr.f32.mxu0 %v21
  %169 = vmatmul.mubr.f32.gmra.mrb[0].mxu0 %v20
  %v170 = vpop.f32.mrb[0].mxu0
  %v171 = vadd.f32 0.0, %v170
  %v172 = vpop.f32.mrb[0].mxu0
  %v173 = vadd.f32 0.0, %v172
  %174 = vdwg.mxu0
  %v175 = vmul.f32 %v153, 2.0
  %v176 = vmul.f32 %v159, 2.0
  %v177 = vmul.f32 %v165, 2.0
  %v178 = vmul.f32 %v171, 2.0
  %v179 = vmul.f32 %v155, 6.2831855
  %v180 = vmul.f32 %v161, 6.2831855
  %v181 = vmul.f32 %v167, 6.2831855
  %v182 = vmul.f32 %v173, 6.2831855
  %v183 = vmul.f32 %v175, %v175
  %v184 = vmul.f32 %v176, %v176
  %v185 = vmul.f32 %v177, %v177
  %v186 = vmul.f32 %v178, %v178
  %v187 = vsub.f32 1.0, %v183
  %v188 = vsub.f32 1.0, %v184
  %v189 = vsub.f32 1.0, %v185
  %v190 = vsub.f32 1.0, %v186
  %v191 = vmax.f32 %v187, 0.0
  %v192 = vmax.f32 %v188, 0.0
  %v193 = vmax.f32 %v189, 0.0
  %v194 = vmax.f32 %v190, 0.0
  %v195 = vrsqrt.pop %v191
  %v196 = vmul.f32 %v191, %v195
  %vm197 = vcmp.eq.f32.partialorder %v191, inf
  %v198 = vsel %vm197, %v191, %v196
  %vm199 = vcmp.eq.f32.partialorder %v191, 0.0
  %v200 = vand.u32 %v191, 2147483648
  %v201 = vsel %vm199, %v200, %v198
  %v202 = vrsqrt.pop %v192
  %v203 = vmul.f32 %v192, %v202
  %vm204 = vcmp.eq.f32.partialorder %v192, inf
  %v205 = vsel %vm204, %v192, %v203
  %vm206 = vcmp.eq.f32.partialorder %v192, 0.0
  %v207 = vand.u32 %v192, 2147483648
  %v208 = vsel %vm206, %v207, %v205
  %v209 = vrsqrt.pop %v193
  %v210 = vmul.f32 %v193, %v209
  %vm211 = vcmp.eq.f32.partialorder %v193, inf
  %v212 = vsel %vm211, %v193, %v210
  %vm213 = vcmp.eq.f32.partialorder %v193, 0.0
  %v214 = vand.u32 %v193, 2147483648
  %v215 = vsel %vm213, %v214, %v212
  %v216 = vrsqrt.pop %v194
  %v217 = vmul.f32 %v194, %v216
  %vm218 = vcmp.eq.f32.partialorder %v194, inf
  %v219 = vsel %vm218, %v194, %v217
  %vm220 = vcmp.eq.f32.partialorder %v194, 0.0
  %v221 = vand.u32 %v194, 2147483648
  %v222 = vsel %vm220, %v221, %v219
  %v223 = vand.u32 2147483647, %v179
  %vm224 = vcmp.le.f32.partialorder %v223, 0.7853982
  %vm225 = vcmp.lt.s32.totalorder %v179, 0
  %v226 = vand.u32 %v179, 2139095040
  %v227 = vshrl.u32 %v226, 23
  %v228 = vsub.s32 %v227, 127
  %v229 = vand.u32 2147483647, %v179
  %v230 = vand.u32 %v229, 8388607
  %v231 = vor.u32 %v230, 8388608
  %v232 = vsub.s32 0, %v231
  %v233 = vadd.s32 %v228, 1
  %vm234 = vcmp.gt.s32.totalorder %v233, 0
  %v235 = vsel %vm234, %v233, 0
  %v236 = vshrl.u32 %v235, 5
  %v237 = vand.u32 %v235, 31
  %v238 = vsub.s32 32, %v237
  %v239 = vshrl.u32 683565275, %v238
  %v240 = vshll.u32 683565275, %v237
  %v241 = vshrl.u32 2475754826, %v238
  %v242 = vor.u32 %v240, %v241
  %v243 = vshll.u32 2475754826, %v237
  %v244 = vshrl.u32 2131351028, %v238
  %v245 = vor.u32 %v243, %v244
  %v246 = vshll.u32 2131351028, %v237
  %v247 = vshrl.u32 2102212464, %v238
  %v248 = vor.u32 %v246, %v247
  %v249 = vshll.u32 2102212464, %v237
  %v250 = vshrl.u32 920167782, %v238
  %v251 = vor.u32 %v249, %v250
  %v252 = vshll.u32 920167782, %v237
  %v253 = vshrl.u32 1326507024, %v238
  %v254 = vor.u32 %v252, %v253
  %vm255 = vcmp.lt.s32.totalorder %v236, 1
  %vm256 = vcmp.lt.s32.totalorder %v236, 2
  %vm257 = vcmp.lt.s32.totalorder %v236, 3
  %vm258 = vcmp.lt.s32.totalorder %v236, 4
  %v259 = vsel %vm255, %v239, %v242
  %v260 = vsel %vm258, %v248, 2102212464
  %v261 = vsel %vm257, %v245, %v260
  %v262 = vsel %vm256, %v259, %v261
  %v263 = vsel %vm255, %v242, %v245
  %v264 = vsel %vm258, %v251, 920167782
  %v265 = vsel %vm257, %v248, %v264
  %v266 = vsel %vm256, %v263, %v265
  %v267 = vsel %vm255, %v245, %v248
  %v268 = vsel %vm258, %v254, 1326507024
  %v269 = vsel %vm257, %v251, %v268
  %v270 = vsel %vm256, %v267, %v269
  %v271 = vshll.u32 %v231, 8
  %v272 = vmul.u32.u64.compose %v271, %v270
  %v273 = vextract.low.u32 %v272
  %v274 = vextract.high.u32 %v272
  %v275 = vmul.u32.u64.compose %v271, %v266
  %v276 = vextract.low.u32 %v275
  %v277 = vextract.high.u32 %v275
  %v278 = vmul.u32 %v271, %v262
  %v279 = vadd.s32 %v274, %v276
  %vm280 = vc.u32 %v274, %v276
  %v281 = vadd.s32 %v277, 1
  %v282 = vsel %vm280, %v281, %v277
  %v283 = vadd.s32 %v278, %v282
  %v284 = vadd.s32 %v283, 536870912
  %v285 = vshrl.u32 %v284, 30
  %v286 = vshll.u32 %v285, 30
  %v287 = vsub.s32 %v283, %v286
  %vm288 = vcmp.lt.s32.totalorder %v287, 0
  %v289 = vsub.s32 0, %v287
  %v290 = vsel %vm288, %v289, %v287
  %v291 = vclz %v290
  %v292 = vsub.s32 %v291, 2
  %vm293 = vcmp.gt.s32.totalorder 0, %v292
  %v294 = vsel %vm293, 0, %v292
  %v295 = vsub.s32 32, %v294
  %v296 = vshll.u32 %v287, %v294
  %v297 = vshrl.u32 %v279, %v295
  %v298 = vor.u32 %v296, %v297
  %v299 = vsub.s32 4294967266, %v294
  %v300 = vadd.s32 %v299, 127
  %v301 = vshll.u32 %v300, 23
  %v302 = vor.u32 4788187, %v301
  %v303 = vand.u32 2147483647, %v302
  %v305 = vcvt.s32.f32 %v298
  %v306 = vmul.f32 %v305, %v303
  %v307 = vxor.u32 %v306, 2147483648
  %v308 = vsel %vm225, %v307, %v306
  %v309 = vsub.s32 4, %v285
  %v310 = vsel %vm225, %v309, %v285
  %v311 = vsel %vm224, %v179, %v308
  %v312 = vsel %vm224, 0, %v310
  %v313 = vcosq.f32.pop %v311
  %v314 = vsinq.f32.pop %v311
  %vm315 = vweird.f32 %v179
  %v316 = vand.u32 %v312, 3
  %vm317 = vcmp.lt.s32.totalorder %v316, 2
  %vm318 = vcmp.eq.s32.totalorder %v316, 0
  %v319 = vxor.u32 %v314, 2147483648
  %v320 = vsel %vm318, %v313, %v319
  %vm321 = vcmp.eq.s32.totalorder %v316, 2
  %v322 = vxor.u32 %v313, 2147483648
  %v323 = vsel %vm321, %v322, %v314
  %v324 = vsel %vm317, %v320, %v323
  %v325 = vsel %vm315, nan, %v324
  %v326 = vand.u32 2147483647, %v180
  %vm327 = vcmp.le.f32.partialorder %v326, 0.7853982
  %vm328 = vcmp.lt.s32.totalorder %v180, 0
  %v329 = vand.u32 %v180, 2139095040
  %v330 = vshrl.u32 %v329, 23
  %v331 = vsub.s32 %v330, 127
  %v332 = vand.u32 2147483647, %v180
  %v333 = vand.u32 %v332, 8388607
  %v334 = vor.u32 %v333, 8388608
  %v335 = vsub.s32 0, %v334
  %v336 = vadd.s32 %v331, 1
  %vm337 = vcmp.gt.s32.totalorder %v336, 0
  %v338 = vsel %vm337, %v336, 0
  %v339 = vshrl.u32 %v338, 5
  %v340 = vand.u32 %v338, 31
  %v341 = vsub.s32 32, %v340
  %v342 = vshrl.u32 683565275, %v341
  %v343 = vshll.u32 683565275, %v340
  %v344 = vshrl.u32 2475754826, %v341
  %v345 = vor.u32 %v343, %v344
  %v346 = vshll.u32 2475754826, %v340
  %v347 = vshrl.u32 2131351028, %v341
  %v348 = vor.u32 %v346, %v347
  %v349 = vshll.u32 2131351028, %v340
  %v350 = vshrl.u32 2102212464, %v341
  %v351 = vor.u32 %v349, %v350
  %v352 = vshll.u32 2102212464, %v340
  %v353 = vshrl.u32 920167782, %v341
  %v354 = vor.u32 %v352, %v353
  %v355 = vshll.u32 920167782, %v340
  %v356 = vshrl.u32 1326507024, %v341
  %v357 = vor.u32 %v355, %v356
  %vm358 = vcmp.lt.s32.totalorder %v339, 1
  %vm359 = vcmp.lt.s32.totalorder %v339, 2
  %vm360 = vcmp.lt.s32.totalorder %v339, 3
  %vm361 = vcmp.lt.s32.totalorder %v339, 4
  %v362 = vsel %vm358, %v342, %v345
  %v363 = vsel %vm361, %v351, 2102212464
  %v364 = vsel %vm360, %v348, %v363
  %v365 = vsel %vm359, %v362, %v364
  %v366 = vsel %vm358, %v345, %v348
  %v367 = vsel %vm361, %v354, 920167782
  %v368 = vsel %vm360, %v351, %v367
  %v369 = vsel %vm359, %v366, %v368
  %v370 = vsel %vm358, %v348, %v351
  %v371 = vsel %vm361, %v357, 1326507024
  %v372 = vsel %vm360, %v354, %v371
  %v373 = vsel %vm359, %v370, %v372
  %v374 = vshll.u32 %v334, 8
  %v375 = vmul.u32.u64.compose %v374, %v373
  %v376 = vextract.low.u32 %v375
  %v377 = vextract.high.u32 %v375
  %v378 = vmul.u32.u64.compose %v374, %v369
  %v379 = vextract.low.u32 %v378
  %v380 = vextract.high.u32 %v378
  %v381 = vmul.u32 %v374, %v365
  %v382 = vadd.s32 %v377, %v379
  %vm383 = vc.u32 %v377, %v379
  %v384 = vadd.s32 %v380, 1
  %v385 = vsel %vm383, %v384, %v380
  %v386 = vadd.s32 %v381, %v385
  %v387 = vadd.s32 %v386, 536870912
  %v388 = vshrl.u32 %v387, 30
  %v389 = vshll.u32 %v388, 30
  %v390 = vsub.s32 %v386, %v389
  %vm391 = vcmp.lt.s32.totalorder %v390, 0
  %v392 = vsub.s32 0, %v390
  %v393 = vsel %vm391, %v392, %v390
  %v394 = vclz %v393
  %v395 = vsub.s32 %v394, 2
  %vm396 = vcmp.gt.s32.totalorder 0, %v395
  %v397 = vsel %vm396, 0, %v395
  %v398 = vsub.s32 32, %v397
  %v399 = vshll.u32 %v390, %v397
  %v400 = vshrl.u32 %v382, %v398
  %v401 = vor.u32 %v399, %v400
  %v402 = vsub.s32 4294967266, %v397
  %v403 = vadd.s32 %v402, 127
  %v404 = vshll.u32 %v403, 23
  %v405 = vor.u32 4788187, %v404
  %v406 = vand.u32 2147483647, %v405
  %v408 = vcvt.s32.f32 %v401
  %v409 = vmul.f32 %v408, %v406
  %v410 = vxor.u32 %v409, 2147483648
  %v411 = vsel %vm328, %v410, %v409
  %v412 = vsub.s32 4, %v388
  %v413 = vsel %vm328, %v412, %v388
  %v414 = vsel %vm327, %v180, %v411
  %v415 = vsel %vm327, 0, %v413
  %v416 = vcosq.f32.pop %v414
  %v417 = vsinq.f32.pop %v414
  %vm418 = vweird.f32 %v180
  %v419 = vand.u32 %v415, 3
  %vm420 = vcmp.lt.s32.totalorder %v419, 2
  %vm421 = vcmp.eq.s32.totalorder %v419, 0
  %v422 = vxor.u32 %v417, 2147483648
  %v423 = vsel %vm421, %v416, %v422
  %vm424 = vcmp.eq.s32.totalorder %v419, 2
  %v425 = vxor.u32 %v416, 2147483648
  %v426 = vsel %vm424, %v425, %v417
  %v427 = vsel %vm420, %v423, %v426
  %v428 = vsel %vm418, nan, %v427
  %v429 = vand.u32 2147483647, %v181
  %vm430 = vcmp.le.f32.partialorder %v429, 0.7853982
  %vm431 = vcmp.lt.s32.totalorder %v181, 0
  %v432 = vand.u32 %v181, 2139095040
  %v433 = vshrl.u32 %v432, 23
  %v434 = vsub.s32 %v433, 127
  %v435 = vand.u32 2147483647, %v181
  %v436 = vand.u32 %v435, 8388607
  %v437 = vor.u32 %v436, 8388608
  %v438 = vsub.s32 0, %v437
  %v439 = vadd.s32 %v434, 1
  %vm440 = vcmp.gt.s32.totalorder %v439, 0
  %v441 = vsel %vm440, %v439, 0
  %v442 = vshrl.u32 %v441, 5
  %v443 = vand.u32 %v441, 31
  %v444 = vsub.s32 32, %v443
  %v445 = vshrl.u32 683565275, %v444
  %v446 = vshll.u32 683565275, %v443
  %v447 = vshrl.u32 2475754826, %v444
  %v448 = vor.u32 %v446, %v447
  %v449 = vshll.u32 2475754826, %v443
  %v450 = vshrl.u32 2131351028, %v444
  %v451 = vor.u32 %v449, %v450
  %v452 = vshll.u32 2131351028, %v443
  %v453 = vshrl.u32 2102212464, %v444
  %v454 = vor.u32 %v452, %v453
  %v455 = vshll.u32 2102212464, %v443
  %v456 = vshrl.u32 920167782, %v444
  %v457 = vor.u32 %v455, %v456
  %v458 = vshll.u32 920167782, %v443
  %v459 = vshrl.u32 1326507024, %v444
  %v460 = vor.u32 %v458, %v459
  %vm461 = vcmp.lt.s32.totalorder %v442, 1
  %vm462 = vcmp.lt.s32.totalorder %v442, 2
  %vm463 = vcmp.lt.s32.totalorder %v442, 3
  %vm464 = vcmp.lt.s32.totalorder %v442, 4
  %v465 = vsel %vm461, %v445, %v448
  %v466 = vsel %vm464, %v454, 2102212464
  %v467 = vsel %vm463, %v451, %v466
  %v468 = vsel %vm462, %v465, %v467
  %v469 = vsel %vm461, %v448, %v451
  %v470 = vsel %vm464, %v457, 920167782
  %v471 = vsel %vm463, %v454, %v470
  %v472 = vsel %vm462, %v469, %v471
  %v473 = vsel %vm461, %v451, %v454
  %v474 = vsel %vm464, %v460, 1326507024
  %v475 = vsel %vm463, %v457, %v474
  %v476 = vsel %vm462, %v473, %v475
  %v477 = vshll.u32 %v437, 8
  %v478 = vmul.u32.u64.compose %v477, %v476
  %v479 = vextract.low.u32 %v478
  %v480 = vextract.high.u32 %v478
  %v481 = vmul.u32.u64.compose %v477, %v472
  %v482 = vextract.low.u32 %v481
  %v483 = vextract.high.u32 %v481
  %v484 = vmul.u32 %v477, %v468
  %v485 = vadd.s32 %v480, %v482
  %vm486 = vc.u32 %v480, %v482
  %v487 = vadd.s32 %v483, 1
  %v488 = vsel %vm486, %v487, %v483
  %v489 = vadd.s32 %v484, %v488
  %v490 = vadd.s32 %v489, 536870912
  %v491 = vshrl.u32 %v490, 30
  %v492 = vshll.u32 %v491, 30
  %v493 = vsub.s32 %v489, %v492
  %vm494 = vcmp.lt.s32.totalorder %v493, 0
  %v495 = vsub.s32 0, %v493
  %v496 = vsel %vm494, %v495, %v493
  %v497 = vclz %v496
  %v498 = vsub.s32 %v497, 2
  %vm499 = vcmp.gt.s32.totalorder 0, %v498
  %v500 = vsel %vm499, 0, %v498
  %v501 = vsub.s32 32, %v500
  %v502 = vshll.u32 %v493, %v500
  %v503 = vshrl.u32 %v485, %v501
  %v504 = vor.u32 %v502, %v503
  %v505 = vsub.s32 4294967266, %v500
  %v506 = vadd.s32 %v505, 127
  %v507 = vshll.u32 %v506, 23
  %v508 = vor.u32 4788187, %v507
  %v509 = vand.u32 2147483647, %v508
  %v511 = vcvt.s32.f32 %v504
  %v512 = vmul.f32 %v511, %v509
  %v513 = vxor.u32 %v512, 2147483648
  %v514 = vsel %vm431, %v513, %v512
  %v515 = vsub.s32 4, %v491
  %v516 = vsel %vm431, %v515, %v491
  %v517 = vsel %vm430, %v181, %v514
  %v518 = vsel %vm430, 0, %v516
  %v519 = vcosq.f32.pop %v517
  %v520 = vsinq.f32.pop %v517
  %vm521 = vweird.f32 %v181
  %v522 = vand.u32 %v518, 3
  %vm523 = vcmp.lt.s32.totalorder %v522, 2
  %vm524 = vcmp.eq.s32.totalorder %v522, 0
  %v525 = vxor.u32 %v520, 2147483648
  %v526 = vsel %vm524, %v519, %v525
  %vm527 = vcmp.eq.s32.totalorder %v522, 2
  %v528 = vxor.u32 %v519, 2147483648
  %v529 = vsel %vm527, %v528, %v520
  %v530 = vsel %vm523, %v526, %v529
  %v531 = vsel %vm521, nan, %v530
  %v532 = vand.u32 2147483647, %v182
  %vm533 = vcmp.le.f32.partialorder %v532, 0.7853982
  %vm534 = vcmp.lt.s32.totalorder %v182, 0
  %v535 = vand.u32 %v182, 2139095040
  %v536 = vshrl.u32 %v535, 23
  %v537 = vsub.s32 %v536, 127
  %v538 = vand.u32 2147483647, %v182
  %v539 = vand.u32 %v538, 8388607
  %v540 = vor.u32 %v539, 8388608
  %v541 = vsub.s32 0, %v540
  %v542 = vadd.s32 %v537, 1
  %vm543 = vcmp.gt.s32.totalorder %v542, 0
  %v544 = vsel %vm543, %v542, 0
  %v545 = vshrl.u32 %v544, 5
  %v546 = vand.u32 %v544, 31
  %v547 = vsub.s32 32, %v546
  %v548 = vshrl.u32 683565275, %v547
  %v549 = vshll.u32 683565275, %v546
  %v550 = vshrl.u32 2475754826, %v547
  %v551 = vor.u32 %v549, %v550
  %v552 = vshll.u32 2475754826, %v546
  %v553 = vshrl.u32 2131351028, %v547
  %v554 = vor.u32 %v552, %v553
  %v555 = vshll.u32 2131351028, %v546
  %v556 = vshrl.u32 2102212464, %v547
  %v557 = vor.u32 %v555, %v556
  %v558 = vshll.u32 2102212464, %v546
  %v559 = vshrl.u32 920167782, %v547
  %v560 = vor.u32 %v558, %v559
  %v561 = vshll.u32 920167782, %v546
  %v562 = vshrl.u32 1326507024, %v547
  %v563 = vor.u32 %v561, %v562
  %vm564 = vcmp.lt.s32.totalorder %v545, 1
  %vm565 = vcmp.lt.s32.totalorder %v545, 2
  %vm566 = vcmp.lt.s32.totalorder %v545, 3
  %vm567 = vcmp.lt.s32.totalorder %v545, 4
  %v568 = vsel %vm564, %v548, %v551
  %v569 = vsel %vm567, %v557, 2102212464
  %v570 = vsel %vm566, %v554, %v569
  %v571 = vsel %vm565, %v568, %v570
  %v572 = vsel %vm564, %v551, %v554
  %v573 = vsel %vm567, %v560, 920167782
  %v574 = vsel %vm566, %v557, %v573
  %v575 = vsel %vm565, %v572, %v574
  %v576 = vsel %vm564, %v554, %v557
  %v577 = vsel %vm567, %v563, 1326507024
  %v578 = vsel %vm566, %v560, %v577
  %v579 = vsel %vm565, %v576, %v578
  %v580 = vshll.u32 %v540, 8
  %v581 = vmul.u32.u64.compose %v580, %v579
  %v582 = vextract.low.u32 %v581
  %v583 = vextract.high.u32 %v581
  %v584 = vmul.u32.u64.compose %v580, %v575
  %v585 = vextract.low.u32 %v584
  %v586 = vextract.high.u32 %v584
  %v587 = vmul.u32 %v580, %v571
  %v588 = vadd.s32 %v583, %v585
  %vm589 = vc.u32 %v583, %v585
  %v590 = vadd.s32 %v586, 1
  %v591 = vsel %vm589, %v590, %v586
  %v592 = vadd.s32 %v587, %v591
  %v593 = vadd.s32 %v592, 536870912
  %v594 = vshrl.u32 %v593, 30
  %v595 = vshll.u32 %v594, 30
  %v596 = vsub.s32 %v592, %v595
  %vm597 = vcmp.lt.s32.totalorder %v596, 0
  %v598 = vsub.s32 0, %v596
  %v599 = vsel %vm597, %v598, %v596
  %v600 = vclz %v599
  %v601 = vsub.s32 %v600, 2
  %vm602 = vcmp.gt.s32.totalorder 0, %v601
  %v603 = vsel %vm602, 0, %v601
  %v604 = vsub.s32 32, %v603
  %v605 = vshll.u32 %v596, %v603
  %v606 = vshrl.u32 %v588, %v604
  %v607 = vor.u32 %v605, %v606
  %v608 = vsub.s32 4294967266, %v603
  %v609 = vadd.s32 %v608, 127
  %v610 = vshll.u32 %v609, 23
  %v611 = vor.u32 4788187, %v610
  %v612 = vand.u32 2147483647, %v611
  %v614 = vcvt.s32.f32 %v607
  %v615 = vmul.f32 %v614, %v612
  %v616 = vxor.u32 %v615, 2147483648
  %v617 = vsel %vm534, %v616, %v615
  %v618 = vsub.s32 4, %v594
  %v619 = vsel %vm534, %v618, %v594
  %v620 = vsel %vm533, %v182, %v617
  %v621 = vsel %vm533, 0, %v619
  %v622 = vcosq.f32.pop %v620
  %v623 = vsinq.f32.pop %v620
  %vm624 = vweird.f32 %v182
  %v625 = vand.u32 %v621, 3
  %vm626 = vcmp.lt.s32.totalorder %v625, 2
  %vm627 = vcmp.eq.s32.totalorder %v625, 0
  %v628 = vxor.u32 %v623, 2147483648
  %v629 = vsel %vm627, %v622, %v628
  %vm630 = vcmp.eq.s32.totalorder %v625, 2
  %v631 = vxor.u32 %v622, 2147483648
  %v632 = vsel %vm630, %v631, %v623
  %v633 = vsel %vm626, %v629, %v632
  %v634 = vsel %vm624, nan, %v633
  %v635 = vmul.f32 %v201, %v325
  %v636 = vmul.f32 %v208, %v428
  %v637 = vmul.f32 %v215, %v531
  %v638 = vmul.f32 %v222, %v634
  %v639 = vand.u32 2147483647, %v179
  %vm640 = vcmp.le.f32.partialorder %v639, 0.7853982
  %vm641 = vcmp.lt.s32.totalorder %v179, 0
  %v642 = vand.u32 %v179, 2139095040
  %v643 = vshrl.u32 %v642, 23
  %v644 = vsub.s32 %v643, 127
  %v645 = vand.u32 2147483647, %v179
  %v646 = vand.u32 %v645, 8388607
  %v647 = vor.u32 %v646, 8388608
  %v648 = vsub.s32 0, %v647
  %v649 = vadd.s32 %v644, 1
  %vm650 = vcmp.gt.s32.totalorder %v649, 0
  %v651 = vsel %vm650, %v649, 0
  %v652 = vshrl.u32 %v651, 5
  %v653 = vand.u32 %v651, 31
  %v654 = vsub.s32 32, %v653
  %v655 = vshrl.u32 683565275, %v654
  %v656 = vshll.u32 683565275, %v653
  %v657 = vshrl.u32 2475754826, %v654
  %v658 = vor.u32 %v656, %v657
  %v659 = vshll.u32 2475754826, %v653
  %v660 = vshrl.u32 2131351028, %v654
  %v661 = vor.u32 %v659, %v660
  %v662 = vshll.u32 2131351028, %v653
  %v663 = vshrl.u32 2102212464, %v654
  %v664 = vor.u32 %v662, %v663
  %v665 = vshll.u32 2102212464, %v653
  %v666 = vshrl.u32 920167782, %v654
  %v667 = vor.u32 %v665, %v666
  %v668 = vshll.u32 920167782, %v653
  %v669 = vshrl.u32 1326507024, %v654
  %v670 = vor.u32 %v668, %v669
  %vm671 = vcmp.lt.s32.totalorder %v652, 1
  %vm672 = vcmp.lt.s32.totalorder %v652, 2
  %vm673 = vcmp.lt.s32.totalorder %v652, 3
  %vm674 = vcmp.lt.s32.totalorder %v652, 4
  %v675 = vsel %vm671, %v655, %v658
  %v676 = vsel %vm674, %v664, 2102212464
  %v677 = vsel %vm673, %v661, %v676
  %v678 = vsel %vm672, %v675, %v677
  %v679 = vsel %vm671, %v658, %v661
  %v680 = vsel %vm674, %v667, 920167782
  %v681 = vsel %vm673, %v664, %v680
  %v682 = vsel %vm672, %v679, %v681
  %v683 = vsel %vm671, %v661, %v664
  %v684 = vsel %vm674, %v670, 1326507024
  %v685 = vsel %vm673, %v667, %v684
  %v686 = vsel %vm672, %v683, %v685
  %v687 = vshll.u32 %v647, 8
  %v688 = vmul.u32.u64.compose %v687, %v686
  %v689 = vextract.low.u32 %v688
  %v690 = vextract.high.u32 %v688
  %v691 = vmul.u32.u64.compose %v687, %v682
  %v692 = vextract.low.u32 %v691
  %v693 = vextract.high.u32 %v691
  %v694 = vmul.u32 %v687, %v678
  %v695 = vadd.s32 %v690, %v692
  %vm696 = vc.u32 %v690, %v692
  %v697 = vadd.s32 %v693, 1
  %v698 = vsel %vm696, %v697, %v693
  %v699 = vadd.s32 %v694, %v698
  %v700 = vadd.s32 %v699, 536870912
  %v701 = vshrl.u32 %v700, 30
  %v702 = vshll.u32 %v701, 30
  %v703 = vsub.s32 %v699, %v702
  %vm704 = vcmp.lt.s32.totalorder %v703, 0
  %v705 = vsub.s32 0, %v703
  %v706 = vsel %vm704, %v705, %v703
  %v707 = vclz %v706
  %v708 = vsub.s32 %v707, 2
  %vm709 = vcmp.gt.s32.totalorder 0, %v708
  %v710 = vsel %vm709, 0, %v708
  %v711 = vsub.s32 32, %v710
  %v712 = vshll.u32 %v703, %v710
  %v713 = vshrl.u32 %v695, %v711
  %v714 = vor.u32 %v712, %v713
  %v715 = vsub.s32 4294967266, %v710
  %v716 = vadd.s32 %v715, 127
  %v717 = vshll.u32 %v716, 23
  %v718 = vor.u32 4788187, %v717
  %v719 = vand.u32 2147483647, %v718
  %v721 = vcvt.s32.f32 %v714
  %v722 = vmul.f32 %v721, %v719
  %v723 = vxor.u32 %v722, 2147483648
  %v724 = vsel %vm641, %v723, %v722
  %v725 = vsub.s32 4, %v701
  %v726 = vsel %vm641, %v725, %v701
  %v727 = vsel %vm640, %v179, %v724
  %v728 = vsel %vm640, 0, %v726
  %v729 = vcosq.f32.pop %v727
  %v730 = vsinq.f32.pop %v727
  %vm731 = vweird.f32 %v179
  %v732 = vadd.s32 %v728, 3
  %v733 = vand.u32 %v732, 3
  %vm734 = vcmp.lt.s32.totalorder %v733, 2
  %vm735 = vcmp.eq.s32.totalorder %v733, 0
  %v736 = vxor.u32 %v730, 2147483648
  %v737 = vsel %vm735, %v729, %v736
  %vm738 = vcmp.eq.s32.totalorder %v733, 2
  %v739 = vxor.u32 %v729, 2147483648
  %v740 = vsel %vm738, %v739, %v730
  %v741 = vsel %vm734, %v737, %v740
  %v742 = vsel %vm731, nan, %v741
  %v743 = vand.u32 2147483647, %v180
  %vm744 = vcmp.le.f32.partialorder %v743, 0.7853982
  %vm745 = vcmp.lt.s32.totalorder %v180, 0
  %v746 = vand.u32 %v180, 2139095040
  %v747 = vshrl.u32 %v746, 23
  %v748 = vsub.s32 %v747, 127
  %v749 = vand.u32 2147483647, %v180
  %v750 = vand.u32 %v749, 8388607
  %v751 = vor.u32 %v750, 8388608
  %v752 = vsub.s32 0, %v751
  %v753 = vadd.s32 %v748, 1
  %vm754 = vcmp.gt.s32.totalorder %v753, 0
  %v755 = vsel %vm754, %v753, 0
  %v756 = vshrl.u32 %v755, 5
  %v757 = vand.u32 %v755, 31
  %v758 = vsub.s32 32, %v757
  %v759 = vshrl.u32 683565275, %v758
  %v760 = vshll.u32 683565275, %v757
  %v761 = vshrl.u32 2475754826, %v758
  %v762 = vor.u32 %v760, %v761
  %v763 = vshll.u32 2475754826, %v757
  %v764 = vshrl.u32 2131351028, %v758
  %v765 = vor.u32 %v763, %v764
  %v766 = vshll.u32 2131351028, %v757
  %v767 = vshrl.u32 2102212464, %v758
  %v768 = vor.u32 %v766, %v767
  %v769 = vshll.u32 2102212464, %v757
  %v770 = vshrl.u32 920167782, %v758
  %v771 = vor.u32 %v769, %v770
  %v772 = vshll.u32 920167782, %v757
  %v773 = vshrl.u32 1326507024, %v758
  %v774 = vor.u32 %v772, %v773
  %vm775 = vcmp.lt.s32.totalorder %v756, 1
  %vm776 = vcmp.lt.s32.totalorder %v756, 2
  %vm777 = vcmp.lt.s32.totalorder %v756, 3
  %vm778 = vcmp.lt.s32.totalorder %v756, 4
  %v779 = vsel %vm775, %v759, %v762
  %v780 = vsel %vm778, %v768, 2102212464
  %v781 = vsel %vm777, %v765, %v780
  %v782 = vsel %vm776, %v779, %v781
  %v783 = vsel %vm775, %v762, %v765
  %v784 = vsel %vm778, %v771, 920167782
  %v785 = vsel %vm777, %v768, %v784
  %v786 = vsel %vm776, %v783, %v785
  %v787 = vsel %vm775, %v765, %v768
  %v788 = vsel %vm778, %v774, 1326507024
  %v789 = vsel %vm777, %v771, %v788
  %v790 = vsel %vm776, %v787, %v789
  %v791 = vshll.u32 %v751, 8
  %v792 = vmul.u32.u64.compose %v791, %v790
  %v793 = vextract.low.u32 %v792
  %v794 = vextract.high.u32 %v792
  %v795 = vmul.u32.u64.compose %v791, %v786
  %v796 = vextract.low.u32 %v795
  %v797 = vextract.high.u32 %v795
  %v798 = vmul.u32 %v791, %v782
  %v799 = vadd.s32 %v794, %v796
  %vm800 = vc.u32 %v794, %v796
  %v801 = vadd.s32 %v797, 1
  %v802 = vsel %vm800, %v801, %v797
  %v803 = vadd.s32 %v798, %v802
  %v804 = vadd.s32 %v803, 536870912
  %v805 = vshrl.u32 %v804, 30
  %v806 = vshll.u32 %v805, 30
  %v807 = vsub.s32 %v803, %v806
  %vm808 = vcmp.lt.s32.totalorder %v807, 0
  %v809 = vsub.s32 0, %v807
  %v810 = vsel %vm808, %v809, %v807
  %v811 = vclz %v810
  %v812 = vsub.s32 %v811, 2
  %vm813 = vcmp.gt.s32.totalorder 0, %v812
  %v814 = vsel %vm813, 0, %v812
  %v815 = vsub.s32 32, %v814
  %v816 = vshll.u32 %v807, %v814
  %v817 = vshrl.u32 %v799, %v815
  %v818 = vor.u32 %v816, %v817
  %v819 = vsub.s32 4294967266, %v814
  %v820 = vadd.s32 %v819, 127
  %v821 = vshll.u32 %v820, 23
  %v822 = vor.u32 4788187, %v821
  %v823 = vand.u32 2147483647, %v822
  %v825 = vcvt.s32.f32 %v818
  %v826 = vmul.f32 %v825, %v823
  %v827 = vxor.u32 %v826, 2147483648
  %v828 = vsel %vm745, %v827, %v826
  %v829 = vsub.s32 4, %v805
  %v830 = vsel %vm745, %v829, %v805
  %v831 = vsel %vm744, %v180, %v828
  %v832 = vsel %vm744, 0, %v830
  %v833 = vcosq.f32.pop %v831
  %v834 = vsinq.f32.pop %v831
  %vm835 = vweird.f32 %v180
  %v836 = vadd.s32 %v832, 3
  %v837 = vand.u32 %v836, 3
  %vm838 = vcmp.lt.s32.totalorder %v837, 2
  %vm839 = vcmp.eq.s32.totalorder %v837, 0
  %v840 = vxor.u32 %v834, 2147483648
  %v841 = vsel %vm839, %v833, %v840
  %vm842 = vcmp.eq.s32.totalorder %v837, 2
  %v843 = vxor.u32 %v833, 2147483648
  %v844 = vsel %vm842, %v843, %v834
  %v845 = vsel %vm838, %v841, %v844
  %v846 = vsel %vm835, nan, %v845
  %v847 = vand.u32 2147483647, %v181
  %vm848 = vcmp.le.f32.partialorder %v847, 0.7853982
  %vm849 = vcmp.lt.s32.totalorder %v181, 0
  %v850 = vand.u32 %v181, 2139095040
  %v851 = vshrl.u32 %v850, 23
  %v852 = vsub.s32 %v851, 127
  %v853 = vand.u32 2147483647, %v181
  %v854 = vand.u32 %v853, 8388607
  %v855 = vor.u32 %v854, 8388608
  %v856 = vsub.s32 0, %v855
  %v857 = vadd.s32 %v852, 1
  %vm858 = vcmp.gt.s32.totalorder %v857, 0
  %v859 = vsel %vm858, %v857, 0
  %v860 = vshrl.u32 %v859, 5
  %v861 = vand.u32 %v859, 31
  %v862 = vsub.s32 32, %v861
  %v863 = vshrl.u32 683565275, %v862
  %v864 = vshll.u32 683565275, %v861
  %v865 = vshrl.u32 2475754826, %v862
  %v866 = vor.u32 %v864, %v865
  %v867 = vshll.u32 2475754826, %v861
  %v868 = vshrl.u32 2131351028, %v862
  %v869 = vor.u32 %v867, %v868
  %v870 = vshll.u32 2131351028, %v861
  %v871 = vshrl.u32 2102212464, %v862
  %v872 = vor.u32 %v870, %v871
  %v873 = vshll.u32 2102212464, %v861
  %v874 = vshrl.u32 920167782, %v862
  %v875 = vor.u32 %v873, %v874
  %v876 = vshll.u32 920167782, %v861
  %v877 = vshrl.u32 1326507024, %v862
  %v878 = vor.u32 %v876, %v877
  %vm879 = vcmp.lt.s32.totalorder %v860, 1
  %vm880 = vcmp.lt.s32.totalorder %v860, 2
  %vm881 = vcmp.lt.s32.totalorder %v860, 3
  %vm882 = vcmp.lt.s32.totalorder %v860, 4
  %v883 = vsel %vm879, %v863, %v866
  %v884 = vsel %vm882, %v872, 2102212464
  %v885 = vsel %vm881, %v869, %v884
  %v886 = vsel %vm880, %v883, %v885
  %v887 = vsel %vm879, %v866, %v869
  %v888 = vsel %vm882, %v875, 920167782
  %v889 = vsel %vm881, %v872, %v888
  %v890 = vsel %vm880, %v887, %v889
  %v891 = vsel %vm879, %v869, %v872
  %v892 = vsel %vm882, %v878, 1326507024
  %v893 = vsel %vm881, %v875, %v892
  %v894 = vsel %vm880, %v891, %v893
  %v895 = vshll.u32 %v855, 8
  %v896 = vmul.u32.u64.compose %v895, %v894
  %v897 = vextract.low.u32 %v896
  %v898 = vextract.high.u32 %v896
  %v899 = vmul.u32.u64.compose %v895, %v890
  %v900 = vextract.low.u32 %v899
  %v901 = vextract.high.u32 %v899
  %v902 = vmul.u32 %v895, %v886
  %v903 = vadd.s32 %v898, %v900
  %vm904 = vc.u32 %v898, %v900
  %v905 = vadd.s32 %v901, 1
  %v906 = vsel %vm904, %v905, %v901
  %v907 = vadd.s32 %v902, %v906
  %v908 = vadd.s32 %v907, 536870912
  %v909 = vshrl.u32 %v908, 30
  %v910 = vshll.u32 %v909, 30
  %v911 = vsub.s32 %v907, %v910
  %vm912 = vcmp.lt.s32.totalorder %v911, 0
  %v913 = vsub.s32 0, %v911
  %v914 = vsel %vm912, %v913, %v911
  %v915 = vclz %v914
  %v916 = vsub.s32 %v915, 2
  %vm917 = vcmp.gt.s32.totalorder 0, %v916
  %v918 = vsel %vm917, 0, %v916
  %v919 = vsub.s32 32, %v918
  %v920 = vshll.u32 %v911, %v918
  %v921 = vshrl.u32 %v903, %v919
  %v922 = vor.u32 %v920, %v921
  %v923 = vsub.s32 4294967266, %v918
  %v924 = vadd.s32 %v923, 127
  %v925 = vshll.u32 %v924, 23
  %v926 = vor.u32 4788187, %v925
  %v927 = vand.u32 2147483647, %v926
  %v929 = vcvt.s32.f32 %v922
  %v930 = vmul.f32 %v929, %v927
  %v931 = vxor.u32 %v930, 2147483648
  %v932 = vsel %vm849, %v931, %v930
  %v933 = vsub.s32 4, %v909
  %v934 = vsel %vm849, %v933, %v909
  %v935 = vsel %vm848, %v181, %v932
  %v936 = vsel %vm848, 0, %v934
  %v937 = vcosq.f32.pop %v935
  %v938 = vsinq.f32.pop %v935
  %vm939 = vweird.f32 %v181
  %v940 = vadd.s32 %v936, 3
  %v941 = vand.u32 %v940, 3
  %vm942 = vcmp.lt.s32.totalorder %v941, 2
  %vm943 = vcmp.eq.s32.totalorder %v941, 0
  %v944 = vxor.u32 %v938, 2147483648
  %v945 = vsel %vm943, %v937, %v944
  %vm946 = vcmp.eq.s32.totalorder %v941, 2
  %v947 = vxor.u32 %v937, 2147483648
  %v948 = vsel %vm946, %v947, %v938
  %v949 = vsel %vm942, %v945, %v948
  %v950 = vsel %vm939, nan, %v949
  %v951 = vand.u32 2147483647, %v182
  %vm952 = vcmp.le.f32.partialorder %v951, 0.7853982
  %vm953 = vcmp.lt.s32.totalorder %v182, 0
  %v954 = vand.u32 %v182, 2139095040
  %v955 = vshrl.u32 %v954, 23
  %v956 = vsub.s32 %v955, 127
  %v957 = vand.u32 2147483647, %v182
  %v958 = vand.u32 %v957, 8388607
  %v959 = vor.u32 %v958, 8388608
  %v960 = vsub.s32 0, %v959
  %v961 = vadd.s32 %v956, 1
  %vm962 = vcmp.gt.s32.totalorder %v961, 0
  %v963 = vsel %vm962, %v961, 0
  %v964 = vshrl.u32 %v963, 5
  %v965 = vand.u32 %v963, 31
  %v966 = vsub.s32 32, %v965
  %v967 = vshrl.u32 683565275, %v966
  %v968 = vshll.u32 683565275, %v965
  %v969 = vshrl.u32 2475754826, %v966
  %v970 = vor.u32 %v968, %v969
  %v971 = vshll.u32 2475754826, %v965
  %v972 = vshrl.u32 2131351028, %v966
  %v973 = vor.u32 %v971, %v972
  %v974 = vshll.u32 2131351028, %v965
  %v975 = vshrl.u32 2102212464, %v966
  %v976 = vor.u32 %v974, %v975
  %v977 = vshll.u32 2102212464, %v965
  %v978 = vshrl.u32 920167782, %v966
  %v979 = vor.u32 %v977, %v978
  %v980 = vshll.u32 920167782, %v965
  %v981 = vshrl.u32 1326507024, %v966
  %v982 = vor.u32 %v980, %v981
  %vm983 = vcmp.lt.s32.totalorder %v964, 1
  %vm984 = vcmp.lt.s32.totalorder %v964, 2
  %vm985 = vcmp.lt.s32.totalorder %v964, 3
  %vm986 = vcmp.lt.s32.totalorder %v964, 4
  %v987 = vsel %vm983, %v967, %v970
  %v988 = vsel %vm986, %v976, 2102212464
  %v989 = vsel %vm985, %v973, %v988
  %v990 = vsel %vm984, %v987, %v989
  %v991 = vsel %vm983, %v970, %v973
  %v992 = vsel %vm986, %v979, 920167782
  %v993 = vsel %vm985, %v976, %v992
  %v994 = vsel %vm984, %v991, %v993
  %v995 = vsel %vm983, %v973, %v976
  %v996 = vsel %vm986, %v982, 1326507024
  %v997 = vsel %vm985, %v979, %v996
  %v998 = vsel %vm984, %v995, %v997
  %v999 = vshll.u32 %v959, 8
  %v1000 = vmul.u32.u64.compose %v999, %v998
  %v1001 = vextract.low.u32 %v1000
  %v1002 = vextract.high.u32 %v1000
  %v1003 = vmul.u32.u64.compose %v999, %v994
  %v1004 = vextract.low.u32 %v1003
  %v1005 = vextract.high.u32 %v1003
  %v1006 = vmul.u32 %v999, %v990
  %v1007 = vadd.s32 %v1002, %v1004
  %vm1008 = vc.u32 %v1002, %v1004
  %v1009 = vadd.s32 %v1005, 1
  %v1010 = vsel %vm1008, %v1009, %v1005
  %v1011 = vadd.s32 %v1006, %v1010
  %v1012 = vadd.s32 %v1011, 536870912
  %v1013 = vshrl.u32 %v1012, 30
  %v1014 = vshll.u32 %v1013, 30
  %v1015 = vsub.s32 %v1011, %v1014
  %vm1016 = vcmp.lt.s32.totalorder %v1015, 0
  %v1017 = vsub.s32 0, %v1015
  %v1018 = vsel %vm1016, %v1017, %v1015
  %v1019 = vclz %v1018
  %v1020 = vsub.s32 %v1019, 2
  %vm1021 = vcmp.gt.s32.totalorder 0, %v1020
  %v1022 = vsel %vm1021, 0, %v1020
  %v1023 = vsub.s32 32, %v1022
  %v1024 = vshll.u32 %v1015, %v1022
  %v1025 = vshrl.u32 %v1007, %v1023
  %v1026 = vor.u32 %v1024, %v1025
  %v1027 = vsub.s32 4294967266, %v1022
  %v1028 = vadd.s32 %v1027, 127
  %v1029 = vshll.u32 %v1028, 23
  %v1030 = vor.u32 4788187, %v1029
  %v1031 = vand.u32 2147483647, %v1030
  %v1033 = vcvt.s32.f32 %v1026
  %v1034 = vmul.f32 %v1033, %v1031
  %v1035 = vxor.u32 %v1034, 2147483648
  %v1036 = vsel %vm953, %v1035, %v1034
  %v1037 = vsub.s32 4, %v1013
  %v1038 = vsel %vm953, %v1037, %v1013
  %v1039 = vsel %vm952, %v182, %v1036
  %v1040 = vsel %vm952, 0, %v1038
  %v1041 = vcosq.f32.pop %v1039
  %v1042 = vsinq.f32.pop %v1039
  %vm1043 = vweird.f32 %v182
  %v1044 = vadd.s32 %v1040, 3
  %v1045 = vand.u32 %v1044, 3
  %vm1046 = vcmp.lt.s32.totalorder %v1045, 2
  %vm1047 = vcmp.eq.s32.totalorder %v1045, 0
  %v1048 = vxor.u32 %v1042, 2147483648
  %v1049 = vsel %vm1047, %v1041, %v1048
  %vm1050 = vcmp.eq.s32.totalorder %v1045, 2
  %v1051 = vxor.u32 %v1041, 2147483648
  %v1052 = vsel %vm1050, %v1051, %v1042
  %v1053 = vsel %vm1046, %v1049, %v1052
  %v1054 = vsel %vm1043, nan, %v1053
  %v1055 = vmul.f32 %v201, %v742
  %v1056 = vmul.f32 %v208, %v846
  %v1057 = vmul.f32 %v215, %v950
  %v1058 = vmul.f32 %v222, %v1054
  %v1059 = vld [vmem:[%s2] sm:$0xff]
  %v1060 = vld [vmem:[%s2 + $0x8] sm:$0xff]
  %v1061 = vld [vmem:[%s2 + $0x10] sm:$0xff]
  %v1062 = vld [vmem:[%s2 + $0x18] sm:$0xff]
  %v1063 = vld [vmem:[%s2 + $0x20] sm:$0xff]
  %v1064 = vld [vmem:[%s2 + $0x28] sm:$0xff]
  %v1065 = vld [vmem:[%s2 + $0x30] sm:$0xff]
  %v1066 = vld [vmem:[%s2 + $0x38] sm:$0xff]
  %v1067 = vld [vmem:[%s2 + $0x40] sm:$0xff]
  %v1068 = vld [vmem:[%s2 + $0x48] sm:$0xff]
  %v1069 = vld [vmem:[%s2 + $0x50] sm:$0xff]
  %v1070 = vld [vmem:[%s2 + $0x58] sm:$0xff]
  %v1071 = vld [vmem:[%s2 + $0x60] sm:$0xff]
  %v1072 = vld [vmem:[%s2 + $0x68] sm:$0xff]
  %v1073 = vld [vmem:[%s2 + $0x70] sm:$0xff]
  %v1074 = vld [vmem:[%s2 + $0x78] sm:$0xff]
  %v1075 = vld [vmem:[%s2 + $0x80] sm:$0xff]
  %v1076 = vld [vmem:[%s2 + $0x88] sm:$0xff]
  %v1077 = vld [vmem:[%s2 + $0x90] sm:$0xff]
  %v1078 = vld [vmem:[%s2 + $0x98] sm:$0xff]
  %v1079 = vld [vmem:[%s2 + $0xa0] sm:$0xff]
  %v1080 = vld [vmem:[%s2 + $0xa8] sm:$0xff]
  %v1081 = vld [vmem:[%s2 + $0xb0] sm:$0xff]
  %v1082 = vld [vmem:[%s2 + $0xb8] sm:$0xff]
  %v1083 = vld [vmem:[%s2 + $0xc0] sm:$0xff]
  %v1084 = vld [vmem:[%s2 + $0xc8] sm:$0xff]
  %v1085 = vld [vmem:[%s2 + $0xd0] sm:$0xff]
  %v1086 = vld [vmem:[%s2 + $0xd8] sm:$0xff]
  %v1087 = vld [vmem:[%s2 + $0xe0] sm:$0xff]
  %v1088 = vld [vmem:[%s2 + $0xe8] sm:$0xff]
  %v1089 = vld [vmem:[%s2 + $0xf0] sm:$0xff]
  %v1090 = vld [vmem:[%s2 + $0xf8] sm:$0xff]
  %v1091 = vld [vmem:[%s2 + $0x100] sm:$0xff]
  %v1092 = vld [vmem:[%s2 + $0x108] sm:$0xff]
  %v1093 = vld [vmem:[%s2 + $0x110] sm:$0xff]
  %v1094 = vld [vmem:[%s2 + $0x118] sm:$0xff]
  %v1095 = vld [vmem:[%s2 + $0x120] sm:$0xff]
  %v1096 = vld [vmem:[%s2 + $0x128] sm:$0xff]
  %v1097 = vld [vmem:[%s2 + $0x130] sm:$0xff]
  %v1098 = vld [vmem:[%s2 + $0x138] sm:$0xff]
  %v1099 = vld [vmem:[%s2 + $0x140] sm:$0xff]
  %v1100 = vld [vmem:[%s2 + $0x148] sm:$0xff]
  %v1101 = vld [vmem:[%s2 + $0x150] sm:$0xff]
  %v1102 = vld [vmem:[%s2 + $0x158] sm:$0xff]
  %v1103 = vld [vmem:[%s2 + $0x160] sm:$0xff]
  %v1104 = vld [vmem:[%s2 + $0x168] sm:$0xff]
  %v1105 = vld [vmem:[%s2 + $0x170] sm:$0xff]
  %v1106 = vld [vmem:[%s2 + $0x178] sm:$0xff]
  %v1107 = vld [vmem:[%s2 + $0x180] sm:$0xff]
  %v1108 = vld [vmem:[%s2 + $0x188] sm:$0xff]
  %v1109 = vld [vmem:[%s2 + $0x190] sm:$0xff]
  %v1110 = vld [vmem:[%s2 + $0x198] sm:$0xff]
  %v1111 = vld [vmem:[%s2 + $0x1a0] sm:$0xff]
  %v1112 = vld [vmem:[%s2 + $0x1a8] sm:$0xff]
  %v1113 = vld [vmem:[%s2 + $0x1b0] sm:$0xff]
  %v1114 = vld [vmem:[%s2 + $0x1b8] sm:$0xff]
  %v1115 = vld [vmem:[%s2 + $0x1c0] sm:$0xff]
  %v1116 = vld [vmem:[%s2 + $0x1c8] sm:$0xff]
  %v1117 = vld [vmem:[%s2 + $0x1d0] sm:$0xff]
  %v1118 = vld [vmem:[%s2 + $0x1d8] sm:$0xff]
  %v1119 = vld [vmem:[%s2 + $0x1e0] sm:$0xff]
  %v1120 = vld [vmem:[%s2 + $0x1e8] sm:$0xff]
  %v1121 = vld [vmem:[%s2 + $0x1f0] sm:$0xff]
  %v1122 = vld [vmem:[%s2 + $0x1f8] sm:$0xff]
  %v1123 = vld [vmem:[%s2 + $0x200] sm:$0xff]
  %v1124 = vld [vmem:[%s2 + $0x208] sm:$0xff]
  %v1125 = vld [vmem:[%s2 + $0x210] sm:$0xff]
  %v1126 = vld [vmem:[%s2 + $0x218] sm:$0xff]
  %v1127 = vld [vmem:[%s2 + $0x220] sm:$0xff]
  %v1128 = vld [vmem:[%s2 + $0x228] sm:$0xff]
  %v1129 = vld [vmem:[%s2 + $0x230] sm:$0xff]
  %v1130 = vld [vmem:[%s2 + $0x238] sm:$0xff]
  %v1131 = vld [vmem:[%s2 + $0x240] sm:$0xff]
  %v1132 = vld [vmem:[%s2 + $0x248] sm:$0xff]
  %v1133 = vld [vmem:[%s2 + $0x250] sm:$0xff]
  %v1134 = vld [vmem:[%s2 + $0x258] sm:$0xff]
  %v1135 = vld [vmem:[%s2 + $0x260] sm:$0xff]
  %v1136 = vld [vmem:[%s2 + $0x268] sm:$0xff]
  %v1137 = vld [vmem:[%s2 + $0x270] sm:$0xff]
  %v1138 = vld [vmem:[%s2 + $0x278] sm:$0xff]
  %v1139 = vld [vmem:[%s2 + $0x280] sm:$0xff]
  %v1140 = vld [vmem:[%s2 + $0x288] sm:$0xff]
  %v1141 = vld [vmem:[%s2 + $0x290] sm:$0xff]
  %v1142 = vld [vmem:[%s2 + $0x298] sm:$0xff]
  %v1143 = vld [vmem:[%s2 + $0x2a0] sm:$0xff]
  %v1144 = vld [vmem:[%s2 + $0x2a8] sm:$0xff]
  %v1145 = vld [vmem:[%s2 + $0x2b0] sm:$0xff]
  %v1146 = vld [vmem:[%s2 + $0x2b8] sm:$0xff]
  %v1147 = vld [vmem:[%s2 + $0x2c0] sm:$0xff]
  %v1148 = vld [vmem:[%s2 + $0x2c8] sm:$0xff]
  %v1149 = vld [vmem:[%s2 + $0x2d0] sm:$0xff]
  %v1150 = vld [vmem:[%s2 + $0x2d8] sm:$0xff]
  %v1151 = vld [vmem:[%s2 + $0x2e0] sm:$0xff]
  %v1152 = vld [vmem:[%s2 + $0x2e8] sm:$0xff]
  %v1153 = vld [vmem:[%s2 + $0x2f0] sm:$0xff]
  %v1154 = vld [vmem:[%s2 + $0x2f8] sm:$0xff]
  %v1155 = vld [vmem:[%s2 + $0x300] sm:$0xff]
  %v1156 = vld [vmem:[%s2 + $0x308] sm:$0xff]
  %v1157 = vld [vmem:[%s2 + $0x310] sm:$0xff]
  %v1158 = vld [vmem:[%s2 + $0x318] sm:$0xff]
  %v1159 = vld [vmem:[%s2 + $0x320] sm:$0xff]
  %v1160 = vld [vmem:[%s2 + $0x328] sm:$0xff]
  %v1161 = vld [vmem:[%s2 + $0x330] sm:$0xff]
  %v1162 = vld [vmem:[%s2 + $0x338] sm:$0xff]
  %v1163 = vld [vmem:[%s2 + $0x340] sm:$0xff]
  %v1164 = vld [vmem:[%s2 + $0x348] sm:$0xff]
  %v1165 = vld [vmem:[%s2 + $0x350] sm:$0xff]
  %v1166 = vld [vmem:[%s2 + $0x358] sm:$0xff]
  %v1167 = vld [vmem:[%s2 + $0x360] sm:$0xff]
  %v1168 = vld [vmem:[%s2 + $0x368] sm:$0xff]
  %v1169 = vld [vmem:[%s2 + $0x370] sm:$0xff]
  %v1170 = vld [vmem:[%s2 + $0x378] sm:$0xff]
  %v1171 = vld [vmem:[%s2 + $0x380] sm:$0xff]
  %v1172 = vld [vmem:[%s2 + $0x388] sm:$0xff]
  %v1173 = vld [vmem:[%s2 + $0x390] sm:$0xff]
  %v1174 = vld [vmem:[%s2 + $0x398] sm:$0xff]
  %v1175 = vld [vmem:[%s2 + $0x3a0] sm:$0xff]
  %v1176 = vld [vmem:[%s2 + $0x3a8] sm:$0xff]
  %v1177 = vld [vmem:[%s2 + $0x3b0] sm:$0xff]
  %v1178 = vld [vmem:[%s2 + $0x3b8] sm:$0xff]
  %v1179 = vld [vmem:[%s2 + $0x3c0] sm:$0xff]
  %v1180 = vld [vmem:[%s2 + $0x3c8] sm:$0xff]
  %v1181 = vld [vmem:[%s2 + $0x3d0] sm:$0xff]
  %v1182 = vld [vmem:[%s2 + $0x3d8] sm:$0xff]
  %v1183 = vld [vmem:[%s2 + $0x3e0] sm:$0xff]
  %v1184 = vld [vmem:[%s2 + $0x3e8] sm:$0xff]
  %v1185 = vld [vmem:[%s2 + $0x3f0] sm:$0xff]
  %v1186 = vld [vmem:[%s2 + $0x3f8] sm:$0xff]
  %v1187 = vld [vmem:[%s2 + $0x400] sm:$0xff]
  %v1188 = vld [vmem:[%s2 + $0x408] sm:$0xff]
  %v1189 = vld [vmem:[%s2 + $0x410] sm:$0xff]
  %v1190 = vld [vmem:[%s2 + $0x418] sm:$0xff]
  %v1191 = vld [vmem:[%s2 + $0x420] sm:$0xff]
  %v1192 = vld [vmem:[%s2 + $0x428] sm:$0xff]
  %v1193 = vld [vmem:[%s2 + $0x430] sm:$0xff]
  %v1194 = vld [vmem:[%s2 + $0x438] sm:$0xff]
  %v1195 = vld [vmem:[%s2 + $0x440] sm:$0xff]
  %v1196 = vld [vmem:[%s2 + $0x448] sm:$0xff]
  %v1197 = vld [vmem:[%s2 + $0x450] sm:$0xff]
  %v1198 = vld [vmem:[%s2 + $0x458] sm:$0xff]
  %v1199 = vld [vmem:[%s2 + $0x460] sm:$0xff]
  %v1200 = vld [vmem:[%s2 + $0x468] sm:$0xff]
  %v1201 = vld [vmem:[%s2 + $0x470] sm:$0xff]
  %v1202 = vld [vmem:[%s2 + $0x478] sm:$0xff]
  %1203 = vmatprep.subr.mxu0 %v1060
  %1204 = vmatpush1.msra.mxu0 %v1059
  %1205 = vmatprep.subr.mxu0 %v1063
  %1206 = vmatpush1.msra.mxu0 %v1062
  %1207 = vmatprep.subr.mxu0 %v1066
  %1208 = vmatpush1.msra.mxu0 %v1065
  %1209 = vmatprep.subr.mxu0 %v1069
  %1210 = vmatpush1.msra.mxu0 %v1068
  %1211 = vmatprep.subr.mxu0 %v1072
  %1212 = vmatpush1.msra.mxu0 %v1071
  %1213 = vmatprep.subr.mxu0 %v1075
  %1214 = vmatpush1.msra.mxu0 %v1074
  %1215 = vmatprep.subr.mxu0 %v1078
  %1216 = vmatpush1.msra.mxu0 %v1077
  %1217 = vmatprep.subr.mxu0 %v1081
  %1218 = vmatpush1.msra.mxu0 %v1080
  %1219 = vmatprep.subr.mxu0 %v1084
  %1220 = vmatpush1.msra.mxu0 %v1083
  %1221 = vmatprep.subr.mxu0 %v1087
  %1222 = vmatpush1.msra.mxu0 %v1086
  %1223 = vmatprep.subr.mxu0 %v1090
  %1224 = vmatpush1.msra.mxu0 %v1089
  %1225 = vmatprep.subr.mxu0 %v1093
  %1226 = vmatpush1.msra.mxu0 %v1092
  %1227 = vmatprep.subr.mxu0 %v1096
  %1228 = vmatpush1.msra.mxu0 %v1095
  %1229 = vmatprep.subr.mxu0 %v1099
  %1230 = vmatpush1.msra.mxu0 %v1098
  %1231 = vmatprep.subr.mxu0 %v1102
  %1232 = vmatpush1.msra.mxu0 %v1101
  %1233 = vmatprep.subr.mxu0 %v1105
  %1234 = vmatpush1.msra.mxu0 %v1104
  %1235 = vmatprep.subr.mxu0 %v1108
  %1236 = vmatpush1.msra.mxu0 %v1107
  %1237 = vmatprep.subr.mxu0 %v1111
  %1238 = vmatpush1.msra.mxu0 %v1110
  %1239 = vmatprep.subr.mxu0 %v1114
  %1240 = vmatpush1.msra.mxu0 %v1113
  %1241 = vmatprep.subr.mxu0 %v1117
  %1242 = vmatpush1.msra.mxu0 %v1116
  %1243 = vmatprep.subr.mxu0 %v1120
  %1244 = vmatpush1.msra.mxu0 %v1119
  %1245 = vmatprep.subr.mxu0 %v1123
  %1246 = vmatpush1.msra.mxu0 %v1122
  %1247 = vmatprep.subr.mxu0 %v1126
  %1248 = vmatpush1.msra.mxu0 %v1125
  %1249 = vmatprep.subr.mxu0 %v1129
  %1250 = vmatpush1.msra.mxu0 %v1128
  %1251 = vmatprep.subr.mxu0 %v1132
  %1252 = vmatpush1.msra.mxu0 %v1131
  %1253 = vmatprep.subr.mxu0 %v1135
  %1254 = vmatpush1.msra.mxu0 %v1134
  %1255 = vmatprep.subr.mxu0 %v1138
  %1256 = vmatpush1.msra.mxu0 %v1137
  %1257 = vmatprep.subr.mxu0 %v1141
  %1258 = vmatpush1.msra.mxu0 %v1140
  %1259 = vmatprep.subr.mxu0 %v1144
  %1260 = vmatpush1.msra.mxu0 %v1143
  %1261 = vmatprep.subr.mxu0 %v1147
  %1262 = vmatpush1.msra.mxu0 %v1146
  %1263 = vmatprep.subr.mxu0 %v1150
  %1264 = vmatpush1.msra.mxu0 %v1149
  %1265 = vmatprep.subr.mxu0 %v1153
  %1266 = vmatpush1.msra.mxu0 %v1152
  %1267 = vmatprep.mubr.f32.mxu0 %v1055
  %1268 = vmatmul.mubr.f32.gmra.mrb[0].mxu0 %v635
  %v1269 = vpop.f32.mrb[0].mxu0
  %v1270 = vadd.f32 0.0, %v1269
  %v1271 = vpop.f32.mrb[0].mxu0
  %v1272 = vadd.f32 0.0, %v1271
  %1273 = vmatprep.mubr.f32.mxu0 %v1056
  %1274 = vmatmul.mubr.f32.gmra.mrb[0].mxu0 %v636
  %v1275 = vpop.f32.mrb[0].mxu0
  %v1276 = vadd.f32 0.0, %v1275
  %v1277 = vpop.f32.mrb[0].mxu0
  %v1278 = vadd.f32 0.0, %v1277
  %1279 = vmatprep.mubr.f32.mxu0 %v1057
  %1280 = vmatmul.mubr.f32.gmra.mrb[0].mxu0 %v637
  %v1281 = vpop.f32.mrb[0].mxu0
  %v1282 = vadd.f32 0.0, %v1281
  %v1283 = vpop.f32.mrb[0].mxu0
  %v1284 = vadd.f32 0.0, %v1283
  %1285 = vmatprep.mubr.f32.mxu0 %v1058
  %1286 = vmatmul.mubr.f32.gmra.mrb[0].mxu0 %v638
  %v1287 = vpop.f32.mrb[0].mxu0
  %v1288 = vadd.f32 0.0, %v1287
  %v1289 = vpop.f32.mrb[0].mxu0
  %v1290 = vadd.f32 0.0, %v1289
  %1291 = vdwg.mxu0
  %1292 = vmatprep.subr.mxu0 %v1156
  %1293 = vmatpush1.msra.mxu0 %v1155
  %1294 = vmatprep.subr.mxu0 %v1159
  %1295 = vmatpush1.msra.mxu0 %v1158
  %1296 = vmatprep.subr.mxu0 %v1162
  %1297 = vmatpush1.msra.mxu0 %v1161
  %1298 = vmatprep.subr.mxu0 %v1165
  %1299 = vmatpush1.msra.mxu0 %v1164
  %1300 = vmatprep.subr.mxu0 %v1168
  %1301 = vmatpush1.msra.mxu0 %v1167
  %1302 = vmatprep.subr.mxu0 %v1171
  %1303 = vmatpush1.msra.mxu0 %v1170
  %1304 = vmatprep.subr.mxu0 %v1174
  %1305 = vmatpush1.msra.mxu0 %v1173
  %1306 = vmatprep.subr.mxu0 %v1177
  %1307 = vmatpush1.msra.mxu0 %v1176
  %1308 = vmatprep.subr.mxu0 %v1180
  %1309 = vmatpush1.msra.mxu0 %v1179
  %1310 = vmatprep.subr.mxu0 %v1183
  %1311 = vmatpush1.msra.mxu0 %v1182
  %1312 = vmatprep.subr.mxu0 %v1186
  %1313 = vmatpush1.msra.mxu0 %v1185
  %1314 = vmatprep.subr.mxu0 %v1189
  %1315 = vmatpush1.msra.mxu0 %v1188
  %1316 = vmatprep.subr.mxu0 %v1192
  %1317 = vmatpush1.msra.mxu0 %v1191
  %1318 = vmatprep.subr.mxu0 %v1195
  %1319 = vmatpush1.msra.mxu0 %v1194
  %1320 = vmatprep.subr.mxu0 %v1198
  %1321 = vmatpush1.msra.mxu0 %v1197
  %1322 = vmatprep.subr.mxu0 %v1201
  %1323 = vmatpush1.msra.mxu0 %v1200
  %1324 = vmatprep.subr.mxu0 0.0
  %1325 = vmatpush1.msra.mxu0 0.0
  %1326 = vmatprep.subr.mxu0 0.0
  %1327 = vmatpush1.msra.mxu0 0.0
  %1328 = vmatprep.subr.mxu0 0.0
  %1329 = vmatpush1.msra.mxu0 0.0
  %1330 = vmatprep.subr.mxu0 0.0
  %1331 = vmatpush1.msra.mxu0 0.0
  %1332 = vmatprep.subr.mxu0 0.0
  %1333 = vmatpush1.msra.mxu0 0.0
  %1334 = vmatprep.subr.mxu0 0.0
  %1335 = vmatpush1.msra.mxu0 0.0
  %1336 = vmatprep.subr.mxu0 0.0
  %1337 = vmatpush1.msra.mxu0 0.0
  %1338 = vmatprep.subr.mxu0 0.0
  %1339 = vmatpush1.msra.mxu0 0.0
  %1340 = vmatprep.subr.mxu0 0.0
  %1341 = vmatpush1.msra.mxu0 0.0
  %1342 = vmatprep.subr.mxu0 0.0
  %1343 = vmatpush1.msra.mxu0 0.0
  %1344 = vmatprep.subr.mxu0 0.0
  %1345 = vmatpush1.msra.mxu0 0.0
  %1346 = vmatprep.subr.mxu0 0.0
  %1347 = vmatpush1.msra.mxu0 0.0
  %1348 = vmatprep.subr.mxu0 0.0
  %1349 = vmatpush1.msra.mxu0 0.0
  %1350 = vmatprep.subr.mxu0 0.0
  %1351 = vmatpush1.msra.mxu0 0.0
  %1352 = vmatprep.subr.mxu0 0.0
  %1353 = vmatpush1.msra.mxu0 0.0
  %1354 = vmatprep.subr.mxu0 0.0
  %1355 = vmatpush1.msra.mxu0 0.0
  %1356 = vmatprep.mubr.f32.mxu0 0.0
  %1357 = vmatmul.mubr.f32.gmra.mrb[0].mxu0 %v175
  %v1358 = vpop.f32.mrb[0].mxu0
  %v1359 = vadd.f32 %v1270, %v1358
  %v1360 = vpop.f32.mrb[0].mxu0
  %v1361 = vadd.f32 %v1272, %v1360
  %1362 = vmatprep.mubr.f32.mxu0 0.0
  %1363 = vmatmul.mubr.f32.gmra.mrb[0].mxu0 %v176
  %v1364 = vpop.f32.mrb[0].mxu0
  %v1365 = vadd.f32 %v1276, %v1364
  %v1366 = vpop.f32.mrb[0].mxu0
  %v1367 = vadd.f32 %v1278, %v1366
  %1368 = vmatprep.mubr.f32.mxu0 0.0
  %1369 = vmatmul.mubr.f32.gmra.mrb[0].mxu0 %v177
  %v1370 = vpop.f32.mrb[0].mxu0
  %v1371 = vadd.f32 %v1282, %v1370
  %v1372 = vpop.f32.mrb[0].mxu0
  %v1373 = vadd.f32 %v1284, %v1372
  %1374 = vmatprep.mubr.f32.mxu0 0.0
  %1375 = vmatmul.mubr.f32.gmra.mrb[0].mxu0 %v178
  %v1376 = vpop.f32.mrb[0].mxu0
  %v1377 = vadd.f32 %v1288, %v1376
  %v1378 = vpop.f32.mrb[0].mxu0
  %v1379 = vadd.f32 %v1290, %v1378
  %1380 = vdwg.mxu0
  %1381 = vmatprep.subr.mxu0 0.0
  %1382 = vmatpush1.msra.mxu0 %v1061
  %1383 = vmatprep.subr.mxu0 0.0
  %1384 = vmatpush1.msra.mxu0 %v1064
  %1385 = vmatprep.subr.mxu0 0.0
  %1386 = vmatpush1.msra.mxu0 %v1067
  %1387 = vmatprep.subr.mxu0 0.0
  %1388 = vmatpush1.msra.mxu0 %v1070
  %1389 = vmatprep.subr.mxu0 0.0
  %1390 = vmatpush1.msra.mxu0 %v1073
  %1391 = vmatprep.subr.mxu0 0.0
  %1392 = vmatpush1.msra.mxu0 %v1076
  %1393 = vmatprep.subr.mxu0 0.0
  %1394 = vmatpush1.msra.mxu0 %v1079
  %1395 = vmatprep.subr.mxu0 0.0
  %1396 = vmatpush1.msra.mxu0 %v1082
  %1397 = vmatprep.subr.mxu0 0.0
  %1398 = vmatpush1.msra.mxu0 %v1085
  %1399 = vmatprep.subr.mxu0 0.0
  %1400 = vmatpush1.msra.mxu0 %v1088
  %1401 = vmatprep.subr.mxu0 0.0
  %1402 = vmatpush1.msra.mxu0 %v1091
  %1403 = vmatprep.subr.mxu0 0.0
  %1404 = vmatpush1.msra.mxu0 %v1094
  %1405 = vmatprep.subr.mxu0 0.0
  %1406 = vmatpush1.msra.mxu0 %v1097
  %1407 = vmatprep.subr.mxu0 0.0
  %1408 = vmatpush1.msra.mxu0 %v1100
  %1409 = vmatprep.subr.mxu0 0.0
  %1410 = vmatpush1.msra.mxu0 %v1103
  %1411 = vmatprep.subr.mxu0 0.0
  %1412 = vmatpush1.msra.mxu0 %v1106
  %1413 = vmatprep.subr.mxu0 0.0
  %1414 = vmatpush1.msra.mxu0 %v1109
  %1415 = vmatprep.subr.mxu0 0.0
  %1416 = vmatpush1.msra.mxu0 %v1112
  %1417 = vmatprep.subr.mxu0 0.0
  %1418 = vmatpush1.msra.mxu0 %v1115
  %1419 = vmatprep.subr.mxu0 0.0
  %1420 = vmatpush1.msra.mxu0 %v1118
  %1421 = vmatprep.subr.mxu0 0.0
  %1422 = vmatpush1.msra.mxu0 %v1121
  %1423 = vmatprep.subr.mxu0 0.0
  %1424 = vmatpush1.msra.mxu0 %v1124
  %1425 = vmatprep.subr.mxu0 0.0
  %1426 = vmatpush1.msra.mxu0 %v1127
  %1427 = vmatprep.subr.mxu0 0.0
  %1428 = vmatpush1.msra.mxu0 %v1130
  %1429 = vmatprep.subr.mxu0 0.0
  %1430 = vmatpush1.msra.mxu0 %v1133
  %1431 = vmatprep.subr.mxu0 0.0
  %1432 = vmatpush1.msra.mxu0 %v1136
  %1433 = vmatprep.subr.mxu0 0.0
  %1434 = vmatpush1.msra.mxu0 %v1139
  %1435 = vmatprep.subr.mxu0 0.0
  %1436 = vmatpush1.msra.mxu0 %v1142
  %1437 = vmatprep.subr.mxu0 0.0
  %1438 = vmatpush1.msra.mxu0 %v1145
  %1439 = vmatprep.subr.mxu0 0.0
  %1440 = vmatpush1.msra.mxu0 %v1148
  %1441 = vmatprep.subr.mxu0 0.0
  %1442 = vmatpush1.msra.mxu0 %v1151
  %1443 = vmatprep.subr.mxu0 0.0
  %1444 = vmatpush1.msra.mxu0 %v1154
  %1445 = vmatprep.mubr.f32.mxu0 %v1055
  %1446 = vmatmul.mubr.f32.gmra.mrb[0].mxu0 %v635
  %v1447 = vpop.f32.mrb[0].mxu0
  %v1448 = vadd.f32 0.0, %v1447
  %v1449 = vpop.f32.mrb[0].mxu0
  %1450 = vmatprep.mubr.f32.mxu0 %v1056
  %1451 = vmatmul.mubr.f32.gmra.mrb[0].mxu0 %v636
  %v1452 = vpop.f32.mrb[0].mxu0
  %v1453 = vadd.f32 0.0, %v1452
  %v1454 = vpop.f32.mrb[0].mxu0
  %1455 = vmatprep.mubr.f32.mxu0 %v1057
  %1456 = vmatmul.mubr.f32.gmra.mrb[0].mxu0 %v637
  %v1457 = vpop.f32.mrb[0].mxu0
  %v1458 = vadd.f32 0.0, %v1457
  %v1459 = vpop.f32.mrb[0].mxu0
  %1460 = vmatprep.mubr.f32.mxu0 %v1058
  %1461 = vmatmul.mubr.f32.gmra.mrb[0].mxu0 %v638
  %v1462 = vpop.f32.mrb[0].mxu0
  %v1463 = vadd.f32 0.0, %v1462
  %v1464 = vpop.f32.mrb[0].mxu0
  %1465 = vdwg.mxu0
  %1466 = vmatprep.subr.mxu0 0.0
  %1467 = vmatpush1.msra.mxu0 %v1157
  %1468 = vmatprep.subr.mxu0 0.0
  %1469 = vmatpush1.msra.mxu0 %v1160
  %1470 = vmatprep.subr.mxu0 0.0
  %1471 = vmatpush1.msra.mxu0 %v1163
  %1472 = vmatprep.subr.mxu0 0.0
  %1473 = vmatpush1.msra.mxu0 %v1166
  %1474 = vmatprep.subr.mxu0 0.0
  %1475 = vmatpush1.msra.mxu0 %v1169
  %1476 = vmatprep.subr.mxu0 0.0
  %1477 = vmatpush1.msra.mxu0 %v1172
  %1478 = vmatprep.subr.mxu0 0.0
  %1479 = vmatpush1.msra.mxu0 %v1175
  %1480 = vmatprep.subr.mxu0 0.0
  %1481 = vmatpush1.msra.mxu0 %v1178
  %1482 = vmatprep.subr.mxu0 0.0
  %1483 = vmatpush1.msra.mxu0 %v1181
  %1484 = vmatprep.subr.mxu0 0.0
  %1485 = vmatpush1.msra.mxu0 %v1184
  %1486 = vmatprep.subr.mxu0 0.0
  %1487 = vmatpush1.msra.mxu0 %v1187
  %1488 = vmatprep.subr.mxu0 0.0
  %1489 = vmatpush1.msra.mxu0 %v1190
  %1490 = vmatprep.subr.mxu0 0.0
  %1491 = vmatpush1.msra.mxu0 %v1193
  %1492 = vmatprep.subr.mxu0 0.0
  %1493 = vmatpush1.msra.mxu0 %v1196
  %1494 = vmatprep.subr.mxu0 0.0
  %1495 = vmatpush1.msra.mxu0 %v1199
  %1496 = vmatprep.subr.mxu0 0.0
  %1497 = vmatpush1.msra.mxu0 %v1202
  %1498 = vmatprep.subr.mxu0 0.0
  %1499 = vmatpush1.msra.mxu0 0.0
  %1500 = vmatprep.subr.mxu0 0.0
  %1501 = vmatpush1.msra.mxu0 0.0
  %1502 = vmatprep.subr.mxu0 0.0
  %1503 = vmatpush1.msra.mxu0 0.0
  %1504 = vmatprep.subr.mxu0 0.0
  %1505 = vmatpush1.msra.mxu0 0.0
  %1506 = vmatprep.subr.mxu0 0.0
  %1507 = vmatpush1.msra.mxu0 0.0
  %1508 = vmatprep.subr.mxu0 0.0
  %1509 = vmatpush1.msra.mxu0 0.0
  %1510 = vmatprep.subr.mxu0 0.0
  %1511 = vmatpush1.msra.mxu0 0.0
  %1512 = vmatprep.subr.mxu0 0.0
  %1513 = vmatpush1.msra.mxu0 0.0
  %1514 = vmatprep.subr.mxu0 0.0
  %1515 = vmatpush1.msra.mxu0 0.0
  %1516 = vmatprep.subr.mxu0 0.0
  %1517 = vmatpush1.msra.mxu0 0.0
  %1518 = vmatprep.subr.mxu0 0.0
  %1519 = vmatpush1.msra.mxu0 0.0
  %1520 = vmatprep.subr.mxu0 0.0
  %1521 = vmatpush1.msra.mxu0 0.0
  %1522 = vmatprep.subr.mxu0 0.0
  %1523 = vmatpush1.msra.mxu0 0.0
  %1524 = vmatprep.subr.mxu0 0.0
  %1525 = vmatpush1.msra.mxu0 0.0
  %1526 = vmatprep.subr.mxu0 0.0
  %1527 = vmatpush1.msra.mxu0 0.0
  %1528 = vmatprep.subr.mxu0 0.0
  %1529 = vmatpush1.msra.mxu0 0.0
  %1530 = vmatprep.mubr.f32.mxu0 0.0
  %1531 = vmatmul.mubr.f32.gmra.mrb[0].mxu0 %v175
  %v1532 = vpop.f32.mrb[0].mxu0
  %v1533 = vadd.f32 %v1448, %v1532
  %v1534 = vpop.f32.mrb[0].mxu0
  %1535 = vmatprep.mubr.f32.mxu0 0.0
  %1536 = vmatmul.mubr.f32.gmra.mrb[0].mxu0 %v176
  %v1537 = vpop.f32.mrb[0].mxu0
  %v1538 = vadd.f32 %v1453, %v1537
  %v1539 = vpop.f32.mrb[0].mxu0
  %1540 = vmatprep.mubr.f32.mxu0 0.0
  %1541 = vmatmul.mubr.f32.gmra.mrb[0].mxu0 %v177
  %v1542 = vpop.f32.mrb[0].mxu0
  %v1543 = vadd.f32 %v1458, %v1542
  %v1544 = vpop.f32.mrb[0].mxu0
  %1545 = vmatprep.mubr.f32.mxu0 0.0
  %1546 = vmatmul.mubr.f32.gmra.mrb[0].mxu0 %v178
  %v1547 = vpop.f32.mrb[0].mxu0
  %v1548 = vadd.f32 %v1463, %v1547
  %v1549 = vpop.f32.mrb[0].mxu0
  %1550 = vdwg.mxu0
  %1551 = vst [vmem:[%s3] sm:$0xff] %v1359
  %1552 = vst [vmem:[%s3 + $0x8] sm:$0xff] %v1361
  %1553 = vst [vmem:[%s3 + $0x10] sm:$0xff] %v1533
  %1554 = vst [vmem:[%s3 + $0x18] sm:$0xff] %v1365
  %1555 = vst [vmem:[%s3 + $0x20] sm:$0xff] %v1367
  %1556 = vst [vmem:[%s3 + $0x28] sm:$0xff] %v1538
  %1557 = vst [vmem:[%s3 + $0x30] sm:$0xff] %v1371
  %1558 = vst [vmem:[%s3 + $0x38] sm:$0xff] %v1373
  %1559 = vst [vmem:[%s3 + $0x40] sm:$0xff] %v1543
  %1560 = vst [vmem:[%s3 + $0x48] sm:$0xff] %v1377
  %1561 = vst [vmem:[%s3 + $0x50] sm:$0xff] %v1379
  %1562 = vst [vmem:[%s3 + $0x58] sm:$0xff] %v1548
  // Predicated region
  $region14: #{material_lookup.1} parent=0 // pred_check
    _
  $region15: #{material_lookup.1} parent=0 // pred_check_branch
    %1564 = sbr.rel (0) target = $region17
  $region16: #{material_lookup.1} parent=0 // pred_region
    _
  $region17: #{material_lookup.1} parent=0 // pred_fallthru
    _
  // Predicated region
  $region18: #{material_lookup.1} parent=0 // pred_check
    _
  $region19: #{material_lookup.1} parent=0 // pred_check_branch
    %1566 = sbr.rel (0) target = $region21
  $region20: #{material_lookup.1} parent=0 // pred_region
    _
  $region21: #{material_lookup.1} parent=0 // pred_fallthru
    _

</llo_original>
